<compile_context>
chip_gen: v7x
topology: tpu7x:2x2x1
jax: 0.10.0
libtpu: 0.0.40
codegen_flags: <defaults>
</compile_context>

<pallas_src>
import functools

import jax
import jax.numpy as jnp
from jax.experimental import pallas as pl
from jax.experimental.pallas import tpu as pltpu


# ---------------------------------------------------------------------------
# Fused kernel: bottle -> [dilated conv -> ReLU -> +res -> BN] x 3
# ---------------------------------------------------------------------------
def _fused_kernel(x_ref, wb_ref, bb_ref, w_ref, b_ref, g_ref, beta_ref,
                  o_ref, stack_ref, *, ksize, dilations, seq_len, eps):
    # Shapes (channel-major, batch folded into lanes):
    #   x_ref:     (Cin, B*L)   f32
    #   wb_ref:    (C, Cin)     f32    bottle weight
    #   bb_ref:    (C, 1)       f32    bottle bias
    #   w_ref:     (3, C, K*C)  bf16   stacked per-tap conv weights
    #   b_/g_/beta_ref: (3, C, 1) f32
    #   o_ref:     (B, C, L)    f32    (stored per-batch, L=lane-dense)
    #   stack_ref: (K*C, B*L)   bf16   persistent MXU-RHS scratch
    cin, BL = x_ref.shape
    B, C, L = o_ref.shape
    half = ksize // 2
    inv_n = 1.0 / BL

    # ---- bottle 1x1 conv -------------------------------------------------
    if cin == 1:
        # Degenerate Cin=1 contraction: VPU broadcast multiply, not MXU.
        x_act = wb_ref[...] * x_ref[...] + bb_ref[...]            # (C, BL)
    else:
        x_act = jnp.dot(wb_ref[...], x_ref[...],
                        preferred_element_type=jnp.float32) + bb_ref[...]

    # ---- halo masks: depend only on (offset, L); hoisted out of the loops -
    l_idx = jax.lax.broadcasted_iota(jnp.int32, (1, BL), 1) % L
    offsets = sorted({(t - half) * dil
                      for dil in dilations for t in range(ksize) if t != half})
    valid_masks = {off: jnp.logical_and(l_idx + off >= 0, l_idx + off < L)
                   for off in offsets}

    for i, dil in enumerate(dilations):
        # ---- build the stacked-shift MXU RHS directly in bf16 -------------
        # Tap t needs x[:, l + (t - K//2)*dil], zero outside each batch's
        # [0, L) segment.  pltpu.roll runs on the XLU slot; the mask zeroes
        # both the wrap-around and cross-batch leakage.
        for t in range(ksize):
            off = (t - half) * dil
            if off == 0:
                tap = x_act
            else:
                rolled = pltpu.roll(x_act, shift=(-off) % BL, axis=1)
                tap = jnp.where(valid_masks[off], rolled, 0.0)
            stack_ref[pl.ds(t * C, C), :] = tap.astype(jnp.bfloat16)

        # ---- dilated conv: ONE MXU contraction, bf16 operands, f32 acc ----
        y = jnp.dot(w_ref[i], stack_ref[...],
                    preferred_element_type=jnp.float32)           # (C, BL)
        y = jnp.maximum(y + b_ref[i], 0.0) + x_act                # bias/ReLU/res

        # ---- BatchNorm1d, batch stats (biased var), one-pass, folded ------
        s = jnp.sum(y, axis=1, keepdims=True)                     # (C, 1)
        sq = jnp.sum(y * y, axis=1, keepdims=True)                # (C, 1)
        mean = s * inv_n
        var = sq * inv_n - mean * mean
        scale = g_ref[i] * jax.lax.rsqrt(var + eps)               # (C, 1)
        shift = beta_ref[i] - mean * scale                        # (C, 1)
        x_act = scale * y + shift                                 # 2 VPU passes

    # ---- lane-dense per-batch stores: (C, L) rows, L = 128 ---------------
    for b in range(B):
        o_ref[b] = x_act[:, b * L:(b + 1) * L]


# ---------------------------------------------------------------------------
# Wrapper: layout plumbing + single pallas_call
# ---------------------------------------------------------------------------
def dilated_conv_forward(x, p, *, ksize, eps=1e-5):
    B, Cin, L = x.shape
    C = p["w_bottle"].shape[0]
    BL = B * L
    dilations = (1, 2, 4)

    # Channel-major, batch folded into the lane dimension: (Cin, B*L).
    x_row = jnp.transpose(x, (1, 0, 2)).reshape(Cin, BL)
    wb = p["w_bottle"].reshape(C, Cin)
    bb = p["b_bottle"].reshape(C, 1)

    # (Cout, Cin, K) -> (Cout, K*Cin): the K taps become one contraction.
    wstack = jnp.stack(
        [jnp.transpose(p[f"w{i}"], (0, 2, 1)).reshape(C, ksize * C)
         for i in range(3)]).astype(jnp.bfloat16)                 # (3, C, K*C)
    bias = jnp.stack([p[f"b{i}"].reshape(C, 1) for i in range(3)])
    gamma = jnp.stack([p[f"g{i}"].reshape(C, 1) for i in range(3)])
    beta = jnp.stack([p[f"beta{i}"].reshape(C, 1) for i in range(3)])

    # VMEM budget sized from the actual buffers (x2 headroom for temporaries
    # x_act / y / masks), clamped to [16 MiB, 48 MiB] — below every chip's
    # physical VMEM, above the v5e 16 MiB scoped default when needed.
    est = (x_row.size * 4 + wb.size * 4 + bb.size * 4 + wstack.size * 2
           + 3 * bias.size * 4 + B * C * L * 4      # in/out buffers
           + ksize * C * BL * 2                      # bf16 stack scratch
           + 6 * C * BL * 4)                         # f32 temporaries
    vmem_limit = int(min(max(2 * est, 16 << 20), 48 << 20))

    kern = functools.partial(_fused_kernel, ksize=ksize, dilations=dilations,
                             seq_len=L, eps=eps)
    vmem = pl.BlockSpec(memory_space=pltpu.MemorySpace.VMEM)
    out = pl.pallas_call(
        kern,
        out_shape=jax.ShapeDtypeStruct((B, C, L), jnp.float32),
        in_specs=[vmem] * 7,
        out_specs=vmem,
        scratch_shapes=[pltpu.VMEM((ksize * C, BL), jnp.bfloat16)],
        compiler_params=pltpu.CompilerParams(vmem_limit_bytes=vmem_limit),
    )(x_row, wb, bb, wstack, bias, gamma, beta)
    return out                                                     # (B, C, L)


# ---------------------------------------------------------------------------
# Deterministic parameter init (matches PyTorch shapes / init distributions)
# ---------------------------------------------------------------------------
def init_params(key, in_channels, out_channels, ksize):
    ks = jax.random.split(key, 8)
    p = {}
    # bottle: Conv1d(in_channels, out_channels, 1), kaiming_normal_
    fan_in = in_channels * 1
    p["w_bottle"] = jax.random.normal(ks[0], (out_channels, in_channels, 1),
                                      jnp.float32) * jnp.sqrt(2.0 / fan_in)
    p["b_bottle"] = jax.random.uniform(ks[1], (out_channels,), jnp.float32,
                                       -1.0 / jnp.sqrt(fan_in),
                                       1.0 / jnp.sqrt(fan_in))
    # dilated layers: Conv1d(out, out, k), kaiming_normal_(relu)
    fan_in = out_channels * ksize
    for i in range(3):
        p[f"w{i}"] = jax.random.normal(ks[2 + i],
                                       (out_channels, out_channels, ksize),
                                       jnp.float32) * jnp.sqrt(2.0 / fan_in)
        p[f"b{i}"] = jax.random.uniform(ks[5 + i], (out_channels,), jnp.float32,
                                        -1.0 / jnp.sqrt(fan_in),
                                        1.0 / jnp.sqrt(fan_in))
        p[f"g{i}"] = jnp.ones((out_channels,), jnp.float32)      # BN gamma
        p[f"beta{i}"] = jnp.zeros((out_channels,), jnp.float32)  # BN beta
    return p


# ---------------------------------------------------------------------------
# Pure-JAX reference (same bf16-operand / f32-accumulate MXU precision).
# NOTE: the 5e-3 tolerance covers bf16 operand rounding; a strict f32 PyTorch
# module would differ from both at the ~1e-3 level.
# ---------------------------------------------------------------------------
def _ref_forward(x, p, *, ksize, eps=1e-5):
    def conv1d(xv, w, b, dil, pad, mxu_dtype=None):
        if mxu_dtype is not None:
            xv = xv.astype(mxu_dtype)
            w = w.astype(mxu_dtype)
        y = jax.lax.conv_general_dilated(
            xv, w, window_strides=(1,), padding=[(pad, pad)],
            rhs_dilation=(dil,), dimension_numbers=("NCH", "OIH", "NCH"),
            preferred_element_type=jnp.float32)
        return y + b[None, :, None]

    def bn(y, g, bt):
        m = y.mean(axis=(0, 2), keepdims=True)
        v = ((y - m) ** 2).mean(axis=(0, 2), keepdims=True)
        return (g[None, :, None] * (y - m) * jax.lax.rsqrt(v + eps)
                + bt[None, :, None])

    xv = conv1d(x, p["w_bottle"], p["b_bottle"], 1, 0)           # bottle in f32
    for i, dil in enumerate((1, 2, 4)):
        y = conv1d(xv, p[f"w{i}"], p[f"b{i}"], dil, (ksize // 2) * dil,
                   mxu_dtype=jnp.bfloat16)
        xv = bn(jnp.maximum(y, 0.0) + xv, p[f"g{i}"], p[f"beta{i}"])
    return xv


if __name__ == "__main__":
    B, Cin, Cout, L, K = 2, 1, 48, 128, 3
    key = jax.random.PRNGKey(0)
    pkey, xkey = jax.random.split(key)
    params = init_params(pkey, Cin, Cout, K)
    x = jax.random.normal(xkey, (B, Cin, L), jnp.float32)

    out = jax.block_until_ready(dilated_conv_forward(x, params, ksize=K))
    ref = jax.block_until_ready(_ref_forward(x, params, ksize=K))

    if not bool(jnp.allclose(out, ref, atol=5e-3, rtol=5e-3)):
        max_err = float(jnp.max(jnp.abs(out - ref)))
        raise AssertionError(
            f"Pallas output mismatch vs JAX reference (max |err|={max_err:.3e})")

    print("KERNEL_OK")
</pallas_src>

<mosaic_0001>
module attributes {stable_mosaic.version = 11 : i64} {
  func.func @_fused_kernel(%arg0: memref<1x256xf32, #tpu.memory_space<vmem>>, %arg1: memref<48x1xf32, #tpu.memory_space<vmem>>, %arg2: memref<48x1xf32, #tpu.memory_space<vmem>>, %arg3: memref<3x48x144xbf16, #tpu.memory_space<vmem>>, %arg4: memref<3x48x1xf32, #tpu.memory_space<vmem>>, %arg5: memref<3x48x1xf32, #tpu.memory_space<vmem>>, %arg6: memref<3x48x1xf32, #tpu.memory_space<vmem>>, %arg7: memref<2x48x128xf32, #tpu.memory_space<vmem>>, %arg8: memref<144x256xbf16, #tpu.memory_space<vmem>>) attributes {dimension_semantics = [], scalar_prefetch = 0 : i64, scratch_operands = 1 : i64, tpu.core_type = #tpu.core_type<tc>} {
    %c0 = arith.constant 0 : index
    %c0_0 = arith.constant 0 : index
    %0 = vector.load %arg1[%c0, %c0_0] : memref<48x1xf32, #tpu.memory_space<vmem>>, vector<48x1xf32>
    %c0_1 = arith.constant 0 : index
    %c0_2 = arith.constant 0 : index
    %1 = vector.load %arg0[%c0_1, %c0_2] : memref<1x256xf32, #tpu.memory_space<vmem>>, vector<1x256xf32>
    %2 = vector.broadcast %0 : vector<48x1xf32> to vector<48x256xf32>
    %3 = vector.broadcast %1 : vector<1x256xf32> to vector<48x256xf32>
    %4 = arith.mulf %2, %3 : vector<48x256xf32>
    %c0_3 = arith.constant 0 : index
    %c0_4 = arith.constant 0 : index
    %5 = vector.load %arg2[%c0_3, %c0_4] : memref<48x1xf32, #tpu.memory_space<vmem>>, vector<48x1xf32>
    %6 = vector.broadcast %5 : vector<48x1xf32> to vector<48x256xf32>
    %7 = arith.addf %4, %6 : vector<48x256xf32>
    %8 = tpu.iota {dimensions = array<i32: 1>} : vector<1x256xi32>
    %c128_i32 = arith.constant 128 : i32
    %c0_i32 = arith.constant 0 : i32
    %9 = arith.cmpi eq, %c128_i32, %c0_i32 : i32
    %c1_i32 = arith.constant 1 : i32
    %10 = arith.select %9, %c1_i32, %c128_i32 : i32
    %11 = vector.broadcast %10 : i32 to vector<1x256xi32>
    %12 = arith.remsi %8, %11 : vector<1x256xi32>
    %c0_i32_5 = arith.constant 0 : i32
    %13 = vector.broadcast %c0_i32_5 : i32 to vector<1x256xi32>
    %14 = arith.cmpi ne, %12, %13 : vector<1x256xi32>
    %c0_i32_6 = arith.constant 0 : i32
    %15 = vector.broadcast %c0_i32_6 : i32 to vector<1x256xi32>
    %16 = arith.cmpi slt, %12, %15 : vector<1x256xi32>
    %c0_i32_7 = arith.constant 0 : i32
    %17 = arith.cmpi slt, %10, %c0_i32_7 : i32
    %18 = vector.broadcast %17 : i1 to vector<1x256xi1>
    %19 = vector.broadcast %18 : vector<1x256xi1> to vector<1x256xi1>
    %20 = arith.xori %16, %19 : vector<1x256xi1>
    %21 = arith.andi %20, %14 : vector<1x256xi1>
    %22 = vector.broadcast %10 : i32 to vector<1x256xi32>
    %23 = arith.addi %12, %22 : vector<1x256xi32>
    %24 = arith.select %21, %23, %12 : vector<1x256xi1>, vector<1x256xi32>
    %c-4_i32 = arith.constant -4 : i32
    %25 = vector.broadcast %c-4_i32 : i32 to vector<1x256xi32>
    %26 = arith.addi %24, %25 : vector<1x256xi32>
    %c0_i32_8 = arith.constant 0 : i32
    %27 = vector.broadcast %c0_i32_8 : i32 to vector<1x256xi32>
    %28 = arith.cmpi sge, %26, %27 : vector<1x256xi32>
    %c-4_i32_9 = arith.constant -4 : i32
    %29 = vector.broadcast %c-4_i32_9 : i32 to vector<1x256xi32>
    %30 = arith.addi %24, %29 : vector<1x256xi32>
    %c128_i32_10 = arith.constant 128 : i32
    %31 = vector.broadcast %c128_i32_10 : i32 to vector<1x256xi32>
    %32 = arith.cmpi slt, %30, %31 : vector<1x256xi32>
    %33 = arith.andi %28, %32 : vector<1x256xi1>
    %c-2_i32 = arith.constant -2 : i32
    %34 = vector.broadcast %c-2_i32 : i32 to vector<1x256xi32>
    %35 = arith.addi %24, %34 : vector<1x256xi32>
    %c0_i32_11 = arith.constant 0 : i32
    %36 = vector.broadcast %c0_i32_11 : i32 to vector<1x256xi32>
    %37 = arith.cmpi sge, %35, %36 : vector<1x256xi32>
    %c-2_i32_12 = arith.constant -2 : i32
    %38 = vector.broadcast %c-2_i32_12 : i32 to vector<1x256xi32>
    %39 = arith.addi %24, %38 : vector<1x256xi32>
    %c128_i32_13 = arith.constant 128 : i32
    %40 = vector.broadcast %c128_i32_13 : i32 to vector<1x256xi32>
    %41 = arith.cmpi slt, %39, %40 : vector<1x256xi32>
    %42 = arith.andi %37, %41 : vector<1x256xi1>
    %c-1_i32 = arith.constant -1 : i32
    %43 = vector.broadcast %c-1_i32 : i32 to vector<1x256xi32>
    %44 = arith.addi %24, %43 : vector<1x256xi32>
    %c0_i32_14 = arith.constant 0 : i32
    %45 = vector.broadcast %c0_i32_14 : i32 to vector<1x256xi32>
    %46 = arith.cmpi sge, %44, %45 : vector<1x256xi32>
    %c-1_i32_15 = arith.constant -1 : i32
    %47 = vector.broadcast %c-1_i32_15 : i32 to vector<1x256xi32>
    %48 = arith.addi %24, %47 : vector<1x256xi32>
    %c128_i32_16 = arith.constant 128 : i32
    %49 = vector.broadcast %c128_i32_16 : i32 to vector<1x256xi32>
    %50 = arith.cmpi slt, %48, %49 : vector<1x256xi32>
    %51 = arith.andi %46, %50 : vector<1x256xi1>
    %c1_i32_17 = arith.constant 1 : i32
    %52 = vector.broadcast %c1_i32_17 : i32 to vector<1x256xi32>
    %53 = arith.addi %24, %52 : vector<1x256xi32>
    %c0_i32_18 = arith.constant 0 : i32
    %54 = vector.broadcast %c0_i32_18 : i32 to vector<1x256xi32>
    %55 = arith.cmpi sge, %53, %54 : vector<1x256xi32>
    %c1_i32_19 = arith.constant 1 : i32
    %56 = vector.broadcast %c1_i32_19 : i32 to vector<1x256xi32>
    %57 = arith.addi %24, %56 : vector<1x256xi32>
    %c128_i32_20 = arith.constant 128 : i32
    %58 = vector.broadcast %c128_i32_20 : i32 to vector<1x256xi32>
    %59 = arith.cmpi slt, %57, %58 : vector<1x256xi32>
    %60 = arith.andi %55, %59 : vector<1x256xi1>
    %c2_i32 = arith.constant 2 : i32
    %61 = vector.broadcast %c2_i32 : i32 to vector<1x256xi32>
    %62 = arith.addi %24, %61 : vector<1x256xi32>
    %c0_i32_21 = arith.constant 0 : i32
    %63 = vector.broadcast %c0_i32_21 : i32 to vector<1x256xi32>
    %64 = arith.cmpi sge, %62, %63 : vector<1x256xi32>
    %c2_i32_22 = arith.constant 2 : i32
    %65 = vector.broadcast %c2_i32_22 : i32 to vector<1x256xi32>
    %66 = arith.addi %24, %65 : vector<1x256xi32>
    %c128_i32_23 = arith.constant 128 : i32
    %67 = vector.broadcast %c128_i32_23 : i32 to vector<1x256xi32>
    %68 = arith.cmpi slt, %66, %67 : vector<1x256xi32>
    %69 = arith.andi %64, %68 : vector<1x256xi1>
    %c4_i32 = arith.constant 4 : i32
    %70 = vector.broadcast %c4_i32 : i32 to vector<1x256xi32>
    %71 = arith.addi %24, %70 : vector<1x256xi32>
    %c0_i32_24 = arith.constant 0 : i32
    %72 = vector.broadcast %c0_i32_24 : i32 to vector<1x256xi32>
    %73 = arith.cmpi sge, %71, %72 : vector<1x256xi32>
    %c4_i32_25 = arith.constant 4 : i32
    %74 = vector.broadcast %c4_i32_25 : i32 to vector<1x256xi32>
    %75 = arith.addi %24, %74 : vector<1x256xi32>
    %c128_i32_26 = arith.constant 128 : i32
    %76 = vector.broadcast %c128_i32_26 : i32 to vector<1x256xi32>
    %77 = arith.cmpi slt, %75, %76 : vector<1x256xi32>
    %78 = arith.andi %73, %77 : vector<1x256xi1>
    %c1_i32_27 = arith.constant 1 : i32
    %79 = tpu.dynamic_rotate %7 by %c1_i32_27 dim 1 : vector<48x256xf32>, i32 -> vector<48x256xf32>
    %cst = arith.constant 0.000000e+00 : f32
    %80 = vector.shape_cast %51 : vector<1x256xi1> to vector<1x256xi1>
    %81 = vector.broadcast %80 : vector<1x256xi1> to vector<48x256xi1>
    %82 = vector.broadcast %cst : f32 to vector<48x256xf32>
    %83 = arith.select %81, %79, %82 : vector<48x256xi1>, vector<48x256xf32>
    %84 = arith.truncf %83 : vector<48x256xf32> to vector<48x256xbf16>
    %c0_28 = arith.constant 0 : index
    %c0_29 = arith.constant 0 : index
    %85 = vector.load %arg8[%c0_28, %c0_29] : memref<144x256xbf16, #tpu.memory_space<vmem>>, vector<48x256xbf16>
    tpu.vector_store %arg8[%c0_28, %c0_29], %84 {strides = array<i32>} : memref<144x256xbf16, #tpu.memory_space<vmem>>, vector<48x256xbf16>,
    %86 = arith.truncf %7 : vector<48x256xf32> to vector<48x256xbf16>
    %c48 = arith.constant 48 : index
    %c0_30 = arith.constant 0 : index
    %87 = vector.load %arg8[%c48, %c0_30] : memref<144x256xbf16, #tpu.memory_space<vmem>>, vector<48x256xbf16>
    tpu.vector_store %arg8[%c48, %c0_30], %86 {strides = array<i32>} : memref<144x256xbf16, #tpu.memory_space<vmem>>, vector<48x256xbf16>,
    %c255_i32 = arith.constant 255 : i32
    %88 = tpu.dynamic_rotate %7 by %c255_i32 dim 1 : vector<48x256xf32>, i32 -> vector<48x256xf32>
    %cst_31 = arith.constant 0.000000e+00 : f32
    %89 = vector.shape_cast %60 : vector<1x256xi1> to vector<1x256xi1>
    %90 = vector.broadcast %89 : vector<1x256xi1> to vector<48x256xi1>
    %91 = vector.broadcast %cst_31 : f32 to vector<48x256xf32>
    %92 = arith.select %90, %88, %91 : vector<48x256xi1>, vector<48x256xf32>
    %93 = arith.truncf %92 : vector<48x256xf32> to vector<48x256xbf16>
    %c96 = arith.constant 96 : index
    %c0_32 = arith.constant 0 : index
    %94 = vector.load %arg8[%c96, %c0_32] : memref<144x256xbf16, #tpu.memory_space<vmem>>, vector<48x256xbf16>
    tpu.vector_store %arg8[%c96, %c0_32], %93 {strides = array<i32>} : memref<144x256xbf16, #tpu.memory_space<vmem>>, vector<48x256xbf16>,
    %c0_33 = arith.constant 0 : index
    %c0_34 = arith.constant 0 : index
    %c0_35 = arith.constant 0 : index
    %95 = vector.load %arg3[%c0_33, %c0_34, %c0_35] : memref<3x48x144xbf16, #tpu.memory_space<vmem>>, vector<1x48x144xbf16>
    %96 = vector.shape_cast %95 : vector<1x48x144xbf16> to vector<48x144xbf16>
    %c0_36 = arith.constant 0 : index
    %c0_37 = arith.constant 0 : index
    %97 = vector.load %arg8[%c0_36, %c0_37] : memref<144x256xbf16, #tpu.memory_space<vmem>>, vector<144x256xbf16>
    %cst_38 = arith.constant dense<0.000000e+00> : vector<48x256xf32>
    %98 = tpu.matmul %96, %97, %cst_38 {dimension_numbers = #tpu.dot_dimension_numbers<[1], [0], [0], [1], [0, 0, 1, 1], [], []>} : vector<48x144xbf16>, vector<144x256xbf16>, vector<48x256xf32> -> vector<48x256xf32>
    %c0_39 = arith.constant 0 : index
    %c0_40 = arith.constant 0 : index
    %c0_41 = arith.constant 0 : index
    %99 = vector.load %arg4[%c0_39, %c0_40, %c0_41] : memref<3x48x1xf32, #tpu.memory_space<vmem>>, vector<1x48x1xf32>
    %100 = vector.shape_cast %99 : vector<1x48x1xf32> to vector<48x1xf32>
    %101 = vector.broadcast %100 : vector<48x1xf32> to vector<48x256xf32>
    %102 = arith.addf %98, %101 : vector<48x256xf32>
    %cst_42 = arith.constant 0.000000e+00 : f32
    %103 = vector.broadcast %cst_42 : f32 to vector<48x256xf32>
    %104 = arith.maximumf %102, %103 : vector<48x256xf32>
    %105 = arith.addf %104, %7 : vector<48x256xf32>
    %cst_43 = arith.constant dense<0.000000e+00> : vector<48xf32>
    %106 = vector.multi_reduction <add>, %105, %cst_43 [1] : vector<48x256xf32> to vector<48xf32>
    %107 = vector.shape_cast %106 : vector<48xf32> to vector<48x1xf32>
    %108 = arith.mulf %105, %105 : vector<48x256xf32>
    %cst_44 = arith.constant dense<0.000000e+00> : vector<48xf32>
    %109 = vector.multi_reduction <add>, %108, %cst_44 [1] : vector<48x256xf32> to vector<48xf32>
    %110 = vector.shape_cast %109 : vector<48xf32> to vector<48x1xf32>
    %cst_45 = arith.constant 3.906250e-03 : f32
    %111 = vector.broadcast %cst_45 : f32 to vector<48x1xf32>
    %112 = arith.mulf %107, %111 : vector<48x1xf32>
    %cst_46 = arith.constant 3.906250e-03 : f32
    %113 = vector.broadcast %cst_46 : f32 to vector<48x1xf32>
    %114 = arith.mulf %110, %113 : vector<48x1xf32>
    %115 = arith.mulf %112, %112 : vector<48x1xf32>
    %116 = arith.subf %114, %115 : vector<48x1xf32>
    %c0_47 = arith.constant 0 : index
    %c0_48 = arith.constant 0 : index
    %c0_49 = arith.constant 0 : index
    %117 = vector.load %arg5[%c0_47, %c0_48, %c0_49] : memref<3x48x1xf32, #tpu.memory_space<vmem>>, vector<1x48x1xf32>
    %118 = vector.shape_cast %117 : vector<1x48x1xf32> to vector<48x1xf32>
    %cst_50 = arith.constant 9.99999974E-6 : f32
    %119 = vector.broadcast %cst_50 : f32 to vector<48x1xf32>
    %120 = arith.addf %116, %119 : vector<48x1xf32>
    %121 = math.rsqrt %120 : vector<48x1xf32>
    %122 = arith.mulf %118, %121 : vector<48x1xf32>
    %c0_51 = arith.constant 0 : index
    %c0_52 = arith.constant 0 : index
    %c0_53 = arith.constant 0 : index
    %123 = vector.load %arg6[%c0_51, %c0_52, %c0_53] : memref<3x48x1xf32, #tpu.memory_space<vmem>>, vector<1x48x1xf32>
    %124 = vector.shape_cast %123 : vector<1x48x1xf32> to vector<48x1xf32>
    %125 = arith.mulf %112, %122 : vector<48x1xf32>
    %126 = arith.subf %124, %125 : vector<48x1xf32>
    %127 = vector.broadcast %122 : vector<48x1xf32> to vector<48x256xf32>
    %128 = arith.mulf %127, %105 : vector<48x256xf32>
    %129 = vector.broadcast %126 : vector<48x1xf32> to vector<48x256xf32>
    %130 = arith.addf %128, %129 : vector<48x256xf32>
    %c2_i32_54 = arith.constant 2 : i32
    %131 = tpu.dynamic_rotate %130 by %c2_i32_54 dim 1 : vector<48x256xf32>, i32 -> vector<48x256xf32>
    %cst_55 = arith.constant 0.000000e+00 : f32
    %132 = vector.shape_cast %42 : vector<1x256xi1> to vector<1x256xi1>
    %133 = vector.broadcast %132 : vector<1x256xi1> to vector<48x256xi1>
    %134 = vector.broadcast %cst_55 : f32 to vector<48x256xf32>
    %135 = arith.select %133, %131, %134 : vector<48x256xi1>, vector<48x256xf32>
    %136 = arith.truncf %135 : vector<48x256xf32> to vector<48x256xbf16>
    %c0_56 = arith.constant 0 : index
    %c0_57 = arith.constant 0 : index
    %137 = vector.load %arg8[%c0_56, %c0_57] : memref<144x256xbf16, #tpu.memory_space<vmem>>, vector<48x256xbf16>
    tpu.vector_store %arg8[%c0_56, %c0_57], %136 {strides = array<i32>} : memref<144x256xbf16, #tpu.memory_space<vmem>>, vector<48x256xbf16>,
    %138 = arith.truncf %130 : vector<48x256xf32> to vector<48x256xbf16>
    %c48_58 = arith.constant 48 : index
    %c0_59 = arith.constant 0 : index
    %139 = vector.load %arg8[%c48_58, %c0_59] : memref<144x256xbf16, #tpu.memory_space<vmem>>, vector<48x256xbf16>
    tpu.vector_store %arg8[%c48_58, %c0_59], %138 {strides = array<i32>} : memref<144x256xbf16, #tpu.memory_space<vmem>>, vector<48x256xbf16>,
    %c254_i32 = arith.constant 254 : i32
    %140 = tpu.dynamic_rotate %130 by %c254_i32 dim 1 : vector<48x256xf32>, i32 -> vector<48x256xf32>
    %cst_60 = arith.constant 0.000000e+00 : f32
    %141 = vector.shape_cast %69 : vector<1x256xi1> to vector<1x256xi1>
    %142 = vector.broadcast %141 : vector<1x256xi1> to vector<48x256xi1>
    %143 = vector.broadcast %cst_60 : f32 to vector<48x256xf32>
    %144 = arith.select %142, %140, %143 : vector<48x256xi1>, vector<48x256xf32>
    %145 = arith.truncf %144 : vector<48x256xf32> to vector<48x256xbf16>
    %c96_61 = arith.constant 96 : index
    %c0_62 = arith.constant 0 : index
    %146 = vector.load %arg8[%c96_61, %c0_62] : memref<144x256xbf16, #tpu.memory_space<vmem>>, vector<48x256xbf16>
    tpu.vector_store %arg8[%c96_61, %c0_62], %145 {strides = array<i32>} : memref<144x256xbf16, #tpu.memory_space<vmem>>, vector<48x256xbf16>,
    %c1 = arith.constant 1 : index
    %c0_63 = arith.constant 0 : index
    %c0_64 = arith.constant 0 : index
    %147 = vector.load %arg3[%c1, %c0_63, %c0_64] : memref<3x48x144xbf16, #tpu.memory_space<vmem>>, vector<1x48x144xbf16>
    %148 = vector.shape_cast %147 : vector<1x48x144xbf16> to vector<48x144xbf16>
    %c0_65 = arith.constant 0 : index
    %c0_66 = arith.constant 0 : index
    %149 = vector.load %arg8[%c0_65, %c0_66] : memref<144x256xbf16, #tpu.memory_space<vmem>>, vector<144x256xbf16>
    %cst_67 = arith.constant dense<0.000000e+00> : vector<48x256xf32>
    %150 = tpu.matmul %148, %149, %cst_67 {dimension_numbers = #tpu.dot_dimension_numbers<[1], [0], [0], [1], [0, 0, 1, 1], [], []>} : vector<48x144xbf16>, vector<144x256xbf16>, vector<48x256xf32> -> vector<48x256xf32>
    %c1_68 = arith.constant 1 : index
    %c0_69 = arith.constant 0 : index
    %c0_70 = arith.constant 0 : index
    %151 = vector.load %arg4[%c1_68, %c0_69, %c0_70] : memref<3x48x1xf32, #tpu.memory_space<vmem>>, vector<1x48x1xf32>
    %152 = vector.shape_cast %151 : vector<1x48x1xf32> to vector<48x1xf32>
    %153 = vector.broadcast %152 : vector<48x1xf32> to vector<48x256xf32>
    %154 = arith.addf %150, %153 : vector<48x256xf32>
    %cst_71 = arith.constant 0.000000e+00 : f32
    %155 = vector.broadcast %cst_71 : f32 to vector<48x256xf32>
    %156 = arith.maximumf %154, %155 : vector<48x256xf32>
    %157 = arith.addf %156, %130 : vector<48x256xf32>
    %cst_72 = arith.constant dense<0.000000e+00> : vector<48xf32>
    %158 = vector.multi_reduction <add>, %157, %cst_72 [1] : vector<48x256xf32> to vector<48xf32>
    %159 = vector.shape_cast %158 : vector<48xf32> to vector<48x1xf32>
    %160 = arith.mulf %157, %157 : vector<48x256xf32>
    %cst_73 = arith.constant dense<0.000000e+00> : vector<48xf32>
    %161 = vector.multi_reduction <add>, %160, %cst_73 [1] : vector<48x256xf32> to vector<48xf32>
    %162 = vector.shape_cast %161 : vector<48xf32> to vector<48x1xf32>
    %cst_74 = arith.constant 3.906250e-03 : f32
    %163 = vector.broadcast %cst_74 : f32 to vector<48x1xf32>
    %164 = arith.mulf %159, %163 : vector<48x1xf32>
    %cst_75 = arith.constant 3.906250e-03 : f32
    %165 = vector.broadcast %cst_75 : f32 to vector<48x1xf32>
    %166 = arith.mulf %162, %165 : vector<48x1xf32>
    %167 = arith.mulf %164, %164 : vector<48x1xf32>
    %168 = arith.subf %166, %167 : vector<48x1xf32>
    %c1_76 = arith.constant 1 : index
    %c0_77 = arith.constant 0 : index
    %c0_78 = arith.constant 0 : index
    %169 = vector.load %arg5[%c1_76, %c0_77, %c0_78] : memref<3x48x1xf32, #tpu.memory_space<vmem>>, vector<1x48x1xf32>
    %170 = vector.shape_cast %169 : vector<1x48x1xf32> to vector<48x1xf32>
    %cst_79 = arith.constant 9.99999974E-6 : f32
    %171 = vector.broadcast %cst_79 : f32 to vector<48x1xf32>
    %172 = arith.addf %168, %171 : vector<48x1xf32>
    %173 = math.rsqrt %172 : vector<48x1xf32>
    %174 = arith.mulf %170, %173 : vector<48x1xf32>
    %c1_80 = arith.constant 1 : index
    %c0_81 = arith.constant 0 : index
    %c0_82 = arith.constant 0 : index
    %175 = vector.load %arg6[%c1_80, %c0_81, %c0_82] : memref<3x48x1xf32, #tpu.memory_space<vmem>>, vector<1x48x1xf32>
    %176 = vector.shape_cast %175 : vector<1x48x1xf32> to vector<48x1xf32>
    %177 = arith.mulf %164, %174 : vector<48x1xf32>
    %178 = arith.subf %176, %177 : vector<48x1xf32>
    %179 = vector.broadcast %174 : vector<48x1xf32> to vector<48x256xf32>
    %180 = arith.mulf %179, %157 : vector<48x256xf32>
    %181 = vector.broadcast %178 : vector<48x1xf32> to vector<48x256xf32>
    %182 = arith.addf %180, %181 : vector<48x256xf32>
    %c4_i32_83 = arith.constant 4 : i32
    %183 = tpu.dynamic_rotate %182 by %c4_i32_83 dim 1 : vector<48x256xf32>, i32 -> vector<48x256xf32>
    %cst_84 = arith.constant 0.000000e+00 : f32
    %184 = vector.shape_cast %33 : vector<1x256xi1> to vector<1x256xi1>
    %185 = vector.broadcast %184 : vector<1x256xi1> to vector<48x256xi1>
    %186 = vector.broadcast %cst_84 : f32 to vector<48x256xf32>
    %187 = arith.select %185, %183, %186 : vector<48x256xi1>, vector<48x256xf32>
    %188 = arith.truncf %187 : vector<48x256xf32> to vector<48x256xbf16>
    %c0_85 = arith.constant 0 : index
    %c0_86 = arith.constant 0 : index
    %189 = vector.load %arg8[%c0_85, %c0_86] : memref<144x256xbf16, #tpu.memory_space<vmem>>, vector<48x256xbf16>
    tpu.vector_store %arg8[%c0_85, %c0_86], %188 {strides = array<i32>} : memref<144x256xbf16, #tpu.memory_space<vmem>>, vector<48x256xbf16>,
    %190 = arith.truncf %182 : vector<48x256xf32> to vector<48x256xbf16>
    %c48_87 = arith.constant 48 : index
    %c0_88 = arith.constant 0 : index
    %191 = vector.load %arg8[%c48_87, %c0_88] : memref<144x256xbf16, #tpu.memory_space<vmem>>, vector<48x256xbf16>
    tpu.vector_store %arg8[%c48_87, %c0_88], %190 {strides = array<i32>} : memref<144x256xbf16, #tpu.memory_space<vmem>>, vector<48x256xbf16>,
    %c252_i32 = arith.constant 252 : i32
    %192 = tpu.dynamic_rotate %182 by %c252_i32 dim 1 : vector<48x256xf32>, i32 -> vector<48x256xf32>
    %cst_89 = arith.constant 0.000000e+00 : f32
    %193 = vector.shape_cast %78 : vector<1x256xi1> to vector<1x256xi1>
    %194 = vector.broadcast %193 : vector<1x256xi1> to vector<48x256xi1>
    %195 = vector.broadcast %cst_89 : f32 to vector<48x256xf32>
    %196 = arith.select %194, %192, %195 : vector<48x256xi1>, vector<48x256xf32>
    %197 = arith.truncf %196 : vector<48x256xf32> to vector<48x256xbf16>
    %c96_90 = arith.constant 96 : index
    %c0_91 = arith.constant 0 : index
    %198 = vector.load %arg8[%c96_90, %c0_91] : memref<144x256xbf16, #tpu.memory_space<vmem>>, vector<48x256xbf16>
    tpu.vector_store %arg8[%c96_90, %c0_91], %197 {strides = array<i32>} : memref<144x256xbf16, #tpu.memory_space<vmem>>, vector<48x256xbf16>,
    %c2 = arith.constant 2 : index
    %c0_92 = arith.constant 0 : index
    %c0_93 = arith.constant 0 : index
    %199 = vector.load %arg3[%c2, %c0_92, %c0_93] : memref<3x48x144xbf16, #tpu.memory_space<vmem>>, vector<1x48x144xbf16>
    %200 = vector.shape_cast %199 : vector<1x48x144xbf16> to vector<48x144xbf16>
    %c0_94 = arith.constant 0 : index
    %c0_95 = arith.constant 0 : index
    %201 = vector.load %arg8[%c0_94, %c0_95] : memref<144x256xbf16, #tpu.memory_space<vmem>>, vector<144x256xbf16>
    %cst_96 = arith.constant dense<0.000000e+00> : vector<48x256xf32>
    %202 = tpu.matmul %200, %201, %cst_96 {dimension_numbers = #tpu.dot_dimension_numbers<[1], [0], [0], [1], [0, 0, 1, 1], [], []>} : vector<48x144xbf16>, vector<144x256xbf16>, vector<48x256xf32> -> vector<48x256xf32>
    %c2_97 = arith.constant 2 : index
    %c0_98 = arith.constant 0 : index
    %c0_99 = arith.constant 0 : index
    %203 = vector.load %arg4[%c2_97, %c0_98, %c0_99] : memref<3x48x1xf32, #tpu.memory_space<vmem>>, vector<1x48x1xf32>
    %204 = vector.shape_cast %203 : vector<1x48x1xf32> to vector<48x1xf32>
    %205 = vector.broadcast %204 : vector<48x1xf32> to vector<48x256xf32>
    %206 = arith.addf %202, %205 : vector<48x256xf32>
    %cst_100 = arith.constant 0.000000e+00 : f32
    %207 = vector.broadcast %cst_100 : f32 to vector<48x256xf32>
    %208 = arith.maximumf %206, %207 : vector<48x256xf32>
    %209 = arith.addf %208, %182 : vector<48x256xf32>
    %cst_101 = arith.constant dense<0.000000e+00> : vector<48xf32>
    %210 = vector.multi_reduction <add>, %209, %cst_101 [1] : vector<48x256xf32> to vector<48xf32>
    %211 = vector.shape_cast %210 : vector<48xf32> to vector<48x1xf32>
    %212 = arith.mulf %209, %209 : vector<48x256xf32>
    %cst_102 = arith.constant dense<0.000000e+00> : vector<48xf32>
    %213 = vector.multi_reduction <add>, %212, %cst_102 [1] : vector<48x256xf32> to vector<48xf32>
    %214 = vector.shape_cast %213 : vector<48xf32> to vector<48x1xf32>
    %cst_103 = arith.constant 3.906250e-03 : f32
    %215 = vector.broadcast %cst_103 : f32 to vector<48x1xf32>
    %216 = arith.mulf %211, %215 : vector<48x1xf32>
    %cst_104 = arith.constant 3.906250e-03 : f32
    %217 = vector.broadcast %cst_104 : f32 to vector<48x1xf32>
    %218 = arith.mulf %214, %217 : vector<48x1xf32>
    %219 = arith.mulf %216, %216 : vector<48x1xf32>
    %220 = arith.subf %218, %219 : vector<48x1xf32>
    %c2_105 = arith.constant 2 : index
    %c0_106 = arith.constant 0 : index
    %c0_107 = arith.constant 0 : index
    %221 = vector.load %arg5[%c2_105, %c0_106, %c0_107] : memref<3x48x1xf32, #tpu.memory_space<vmem>>, vector<1x48x1xf32>
    %222 = vector.shape_cast %221 : vector<1x48x1xf32> to vector<48x1xf32>
    %cst_108 = arith.constant 9.99999974E-6 : f32
    %223 = vector.broadcast %cst_108 : f32 to vector<48x1xf32>
    %224 = arith.addf %220, %223 : vector<48x1xf32>
    %225 = math.rsqrt %224 : vector<48x1xf32>
    %226 = arith.mulf %222, %225 : vector<48x1xf32>
    %c2_109 = arith.constant 2 : index
    %c0_110 = arith.constant 0 : index
    %c0_111 = arith.constant 0 : index
    %227 = vector.load %arg6[%c2_109, %c0_110, %c0_111] : memref<3x48x1xf32, #tpu.memory_space<vmem>>, vector<1x48x1xf32>
    %228 = vector.shape_cast %227 : vector<1x48x1xf32> to vector<48x1xf32>
    %229 = arith.mulf %216, %226 : vector<48x1xf32>
    %230 = arith.subf %228, %229 : vector<48x1xf32>
    %231 = vector.broadcast %226 : vector<48x1xf32> to vector<48x256xf32>
    %232 = arith.mulf %231, %209 : vector<48x256xf32>
    %233 = vector.broadcast %230 : vector<48x1xf32> to vector<48x256xf32>
    %234 = arith.addf %232, %233 : vector<48x256xf32>
    %235 = vector.extract_strided_slice %234 {offsets = [0, 0], sizes = [48, 128], strides = [1, 1]} : vector<48x256xf32> to vector<48x128xf32>
    %c0_112 = arith.constant 0 : index
    %c0_113 = arith.constant 0 : index
    %c0_114 = arith.constant 0 : index
    %236 = vector.load %arg7[%c0_112, %c0_113, %c0_114] : memref<2x48x128xf32, #tpu.memory_space<vmem>>, vector<1x48x128xf32>
    %237 = vector.shape_cast %236 : vector<1x48x128xf32> to vector<48x128xf32>
    %238 = vector.shape_cast %235 : vector<48x128xf32> to vector<1x48x128xf32>
    tpu.vector_store %arg7[%c0_112, %c0_113, %c0_114], %238 {strides = array<i32>} : memref<2x48x128xf32, #tpu.memory_space<vmem>>, vector<1x48x128xf32>,
    %239 = vector.extract_strided_slice %234 {offsets = [0, 128], sizes = [48, 128], strides = [1, 1]} : vector<48x256xf32> to vector<48x128xf32>
    %c1_115 = arith.constant 1 : index
    %c0_116 = arith.constant 0 : index
    %c0_117 = arith.constant 0 : index
    %240 = vector.load %arg7[%c1_115, %c0_116, %c0_117] : memref<2x48x128xf32, #tpu.memory_space<vmem>>, vector<1x48x128xf32>
    %241 = vector.shape_cast %240 : vector<1x48x128xf32> to vector<48x128xf32>
    %242 = vector.shape_cast %239 : vector<48x128xf32> to vector<1x48x128xf32>
    tpu.vector_store %arg7[%c1_115, %c0_116, %c0_117], %242 {strides = array<i32>} : memref<2x48x128xf32, #tpu.memory_space<vmem>>, vector<1x48x128xf32>,
    return
  }
}

</mosaic_0001>

<llo_original>
// kernel: tpu_custom_call.1
$region0: #{tpu_custom_call.1}
  #allocation0 [shape = 'u32[]', space=smem, size = 0x4, offset = 0x4, fixed_abs, tag = 'smem constant byte address 0x4 - core index']
  #allocation1 [shape = 'u32[144,128]{1,0:T(1,128)}', space=vmem, size = 0x12000, scoped, tag = 'internal scratch']
  #allocation2 [shape = 'bf16[144,256]{1,0:T(16,128)(2,1)}', space=vmem, size = 0x12000, scoped, tag = 'scratch operand']
  %s0 = inlined_call_operand.vmem [shape: f32[1,256], index: 0, kind: input, shape index: {}]
  %s1 = inlined_call_operand.vmem [shape: f32[48,1], index: 1, kind: input, shape index: {}]
  %s2 = inlined_call_operand.vmem [shape: f32[48,1], index: 2, kind: input, shape index: {}]
  %s3 = inlined_call_operand.vmem [shape: bf16[3,48,144], index: 3, kind: input, shape index: {}]
  %s4 = inlined_call_operand.vmem [shape: f32[3,48,1], index: 4, kind: input, shape index: {}]
  %s5 = inlined_call_operand.vmem [shape: f32[3,48,1], index: 5, kind: input, shape index: {}]
  %s6 = inlined_call_operand.vmem [shape: f32[3,48,1], index: 6, kind: input, shape index: {}]
  %s7 = inlined_call_operand.hbm [shape: f32[2,48,128], index: 7, kind: output, shape index: {}]
  %s8 = sld [smem:[#allocation0]]
  $region38: #{tpu_custom_call.1} parent=0
    _
  %s10 = ssub.s32 1, %s8
  %s11 = scalar_select 0, %s10, %s8
  $region1: #{tpu_custom_call.1} parent=0
    #allocation3 [shape = 'u8[49152]{0}', space=vmem, size = 0xc000, scoped, tag = 'output window, operand 0, single buffered']
    #allocation4 [shape = 's32[1]{0}', space=sflag, size = 0x4, scoped, tag = 'scoped memory for tpu_custom_call.1']
    %12 = vsyncpa [#allocation4], 0
    // Predicated region
    $region2: #{tpu_custom_call.1} parent=1 // pred_check
      _
    $region3: #{tpu_custom_call.1} parent=1 // pred_check_branch
      %14 = sbr.rel (0) target = $region5
    $region4: #{tpu_custom_call.1} parent=1 // pred_region
      _
    $region5: #{tpu_custom_call.1} parent=1 // pred_fallthru
      _
    // Predicated region
    $region6: #{tpu_custom_call.1} parent=1 // pred_check
      _
    $region7: #{tpu_custom_call.1} parent=1 // pred_check_branch
      %16 = sbr.rel (0) target = $region9
    $region8: #{tpu_custom_call.1} parent=1 // pred_region
      _
    $region9: #{tpu_custom_call.1} parent=1 // pred_fallthru
      _
    // Predicated region
    $region10: #{tpu_custom_call.1} parent=1 // pred_check
      _
    $region11: #{tpu_custom_call.1} parent=1 // pred_check_branch
      %18 = sbr.rel (0) target = $region13
    $region12: #{tpu_custom_call.1} parent=1 // pred_region
      _
    $region13: #{tpu_custom_call.1} parent=1 // pred_fallthru
      _
    // Predicated region
    $region14: #{tpu_custom_call.1} parent=1 // pred_check
      _
    $region15: #{tpu_custom_call.1} parent=1 // pred_check_branch
      %20 = sbr.rel (0) target = $region17
    $region16: #{tpu_custom_call.1} parent=1 // pred_region
      _
    $region17: #{tpu_custom_call.1} parent=1 // pred_fallthru
      _
    // Predicated region
    $region18: #{tpu_custom_call.1} parent=1 // pred_check
      _
    $region19: #{tpu_custom_call.1} parent=1 // pred_check_branch
      %22 = sbr.rel (0) target = $region21
    $region20: #{tpu_custom_call.1} parent=1 // pred_region
      _
    $region21: #{tpu_custom_call.1} parent=1 // pred_fallthru
      _
    // Predicated region
    $region22: #{tpu_custom_call.1} parent=1 // pred_check
      _
    $region23: #{tpu_custom_call.1} parent=1 // pred_check_branch
      %24 = sbr.rel (0) target = $region25
    $region24: #{tpu_custom_call.1} parent=1 // pred_region
      _
    $region25: #{tpu_custom_call.1} parent=1 // pred_fallthru
      _
    // Predicated region
    $region26: #{tpu_custom_call.1} parent=1 // pred_check
      _
    $region27: #{tpu_custom_call.1} parent=1 // pred_check_branch
      %26 = sbr.rel (0) target = $region29
    $region28: #{tpu_custom_call.1} parent=1 // pred_region
      _
    $region29: #{tpu_custom_call.1} parent=1 // pred_fallthru
      _
    %v28 = vld [vmem:[%s1] sm:$0xff]
    %v29 = vld [vmem:[%s1 + $0x8] sm:$0xff]
    %v30 = vld [vmem:[%s1 + $0x10] sm:$0xff]
    %v31 = vld [vmem:[%s1 + $0x18] sm:$0xff]
    %v32 = vld [vmem:[%s1 + $0x20] sm:$0xff]
    %v33 = vld [vmem:[%s1 + $0x28] sm:$0xff]
    %v34 = vld [vmem:[%s0] sm:$0x3]
    %36 = vset.pattern.permute.xlu0 0
    %37 = vperm.xlu0 %36, %v28
    %v38 = vpop.permute.xlu0 %37
    %41 = vset.pattern.permute.xlu0 0
    %42 = vperm.xlu0 %41, %v29
    %v43 = vpop.permute.xlu0 %42
    %46 = vset.pattern.permute.xlu0 0
    %47 = vperm.xlu0 %46, %v30
    %v48 = vpop.permute.xlu0 %47
    %51 = vset.pattern.permute.xlu0 0
    %52 = vperm.xlu0 %51, %v31
    %v53 = vpop.permute.xlu0 %52
    %56 = vset.pattern.permute.xlu0 0
    %57 = vperm.xlu0 %56, %v32
    %v58 = vpop.permute.xlu0 %57
    %61 = vset.pattern.permute.xlu0 0
    %62 = vperm.xlu0 %61, %v33
    %v63 = vpop.permute.xlu0 %62
    %v66 = vlaneseq
    %v67 = vshrl.u32 %v66, 7
    %v68 = vsub.s32 0, %v67
    %v69 = vrot.slane %v34, %v68
    %v70 = vlaneseq
    %v71 = vshrl.u32 %v70, 7
    %v72 = vsub.s32 1, %v71
    %v73 = vrot.slane %v34, %v72
    %v76 = vmul.f32 %v38, %v69
    %v77 = vmul.f32 %v38, %v73
    %v78 = vmul.f32 %v43, %v69
    %v79 = vmul.f32 %v43, %v73
    %v80 = vmul.f32 %v48, %v69
    %v81 = vmul.f32 %v48, %v73
    %v82 = vmul.f32 %v53, %v69
    %v83 = vmul.f32 %v53, %v73
    %v84 = vmul.f32 %v58, %v69
    %v85 = vmul.f32 %v58, %v73
    %v86 = vmul.f32 %v63, %v69
    %v87 = vmul.f32 %v63, %v73
    %v88 = vld [vmem:[%s2] sm:$0xff]
    %v89 = vld [vmem:[%s2 + $0x8] sm:$0xff]
    %v90 = vld [vmem:[%s2 + $0x10] sm:$0xff]
    %v91 = vld [vmem:[%s2 + $0x18] sm:$0xff]
    %v92 = vld [vmem:[%s2 + $0x20] sm:$0xff]
    %v93 = vld [vmem:[%s2 + $0x28] sm:$0xff]
    %95 = vset.pattern.permute.xlu0 0
    %96 = vperm.xlu0 %95, %v88
    %v97 = vpop.permute.xlu0 %96
    %100 = vset.pattern.permute.xlu0 0
    %101 = vperm.xlu0 %100, %v89
    %v102 = vpop.permute.xlu0 %101
    %105 = vset.pattern.permute.xlu0 0
    %106 = vperm.xlu0 %105, %v90
    %v107 = vpop.permute.xlu0 %106
    %110 = vset.pattern.permute.xlu0 0
    %111 = vperm.xlu0 %110, %v91
    %v112 = vpop.permute.xlu0 %111
    %115 = vset.pattern.permute.xlu0 0
    %116 = vperm.xlu0 %115, %v92
    %v117 = vpop.permute.xlu0 %116
    %120 = vset.pattern.permute.xlu0 0
    %121 = vperm.xlu0 %120, %v93
    %v122 = vpop.permute.xlu0 %121
    %v124 = vadd.f32 %v76, %v97
    %v125 = vadd.f32 %v77, %v97
    %v126 = vadd.f32 %v78, %v102
    %v127 = vadd.f32 %v79, %v102
    %v128 = vadd.f32 %v80, %v107
    %v129 = vadd.f32 %v81, %v107
    %v130 = vadd.f32 %v82, %v112
    %v131 = vadd.f32 %v83, %v112
    %v132 = vadd.f32 %v84, %v117
    %v133 = vadd.f32 %v85, %v117
    %v134 = vadd.f32 %v86, %v122
    %v135 = vadd.f32 %v87, %v122
    %v136 = vlaneseq
    %v137 = vand.u32 %v136, 127
    %v138 = vadd.s32 %v137, 128
    %vm139 = vcmp.lt.s32.totalorder %v137, 0
    %v140 = vsub.s32 0, %v137
    %v141 = vsel %vm139, %v140, %v137
    %v142 = vshrl.u32 %v141, 7
    %v143 = vand.u32 %v141, 127
    %v144 = vsub.s32 0, %v143
    %v145 = vsel %vm139, %v144, %v143
    %vm146 = vcmp.lt.s32.totalorder %v138, 0
    %v147 = vsub.s32 0, %v138
    %v148 = vsel %vm146, %v147, %v138
    %v149 = vshrl.u32 %v148, 7
    %v150 = vand.u32 %v148, 127
    %v151 = vsub.s32 0, %v150
    %v152 = vsel %vm146, %v151, %v150
    %vm153 = vcmp.ne.s32.totalorder %v145, 0
    %vm154 = vcmp.ne.s32.totalorder %v152, 0
    %vm155 = vcmp.lt.s32.totalorder %v145, 0
    %vm156 = vcmp.lt.s32.totalorder %v152, 0
    %vm157 = vmand %vm155, %vm153
    %vm158 = vmand %vm156, %vm154
    %v159 = vadd.s32 %v145, 128
    %v160 = vadd.s32 %v152, 128
    %v161 = vsel %vm157, %v159, %v145
    %v162 = vsel %vm158, %v160, %v152
    %v163 = vadd.s32 %v161, 4294967292
    %v164 = vadd.s32 %v162, 4294967292
    %vm165 = vcmp.ge.s32.totalorder %v163, 0
    %vm166 = vcmp.ge.s32.totalorder %v164, 0
    %vm167 = vcmp.lt.s32.totalorder %v163, 128
    %vm168 = vcmp.lt.s32.totalorder %v164, 128
    %vm169 = vmand %vm165, %vm167
    %vm170 = vmand %vm166, %vm168
    %v171 = vadd.s32 %v161, 4294967294
    %v172 = vadd.s32 %v162, 4294967294
    %vm173 = vcmp.ge.s32.totalorder %v171, 0
    %vm174 = vcmp.ge.s32.totalorder %v172, 0
    %vm175 = vcmp.lt.s32.totalorder %v171, 128
    %vm176 = vcmp.lt.s32.totalorder %v172, 128
    %vm177 = vmand %vm173, %vm175
    %vm178 = vmand %vm174, %vm176
    %v179 = vadd.s32 %v161, 4294967295
    %v180 = vadd.s32 %v162, 4294967295
    %vm181 = vcmp.ge.s32.totalorder %v179, 0
    %vm182 = vcmp.ge.s32.totalorder %v180, 0
    %vm183 = vcmp.lt.s32.totalorder %v179, 128
    %vm184 = vcmp.lt.s32.totalorder %v180, 128
    %vm185 = vmand %vm181, %vm183
    %vm186 = vmand %vm182, %vm184
    %v187 = vadd.s32 %v161, 1
    %v188 = vadd.s32 %v162, 1
    %vm189 = vcmp.ge.s32.totalorder %v187, 0
    %vm190 = vcmp.ge.s32.totalorder %v188, 0
    %vm191 = vcmp.lt.s32.totalorder %v187, 128
    %vm192 = vcmp.lt.s32.totalorder %v188, 128
    %vm193 = vmand %vm189, %vm191
    %vm194 = vmand %vm190, %vm192
    %v195 = vadd.s32 %v161, 2
    %v196 = vadd.s32 %v162, 2
    %vm197 = vcmp.ge.s32.totalorder %v195, 0
    %vm198 = vcmp.ge.s32.totalorder %v196, 0
    %vm199 = vcmp.lt.s32.totalorder %v195, 128
    %vm200 = vcmp.lt.s32.totalorder %v196, 128
    %vm201 = vmand %vm197, %vm199
    %vm202 = vmand %vm198, %vm200
    %v203 = vadd.s32 %v161, 4
    %v204 = vadd.s32 %v162, 4
    %vm205 = vcmp.ge.s32.totalorder %v203, 0
    %vm206 = vcmp.ge.s32.totalorder %v204, 0
    %vm207 = vcmp.lt.s32.totalorder %v203, 128
    %vm208 = vcmp.lt.s32.totalorder %v204, 128
    %vm209 = vmand %vm205, %vm207
    %vm210 = vmand %vm206, %vm208
    %211 = vrot.lane.b32.xlu0 %v124, 1
    %v212 = vpop.permute.xlu0 %211
    %213 = vrot.lane.b32.xlu0 %v126, 1
    %v214 = vpop.permute.xlu0 %213
    %215 = vrot.lane.b32.xlu0 %v128, 1
    %v216 = vpop.permute.xlu0 %215
    %217 = vrot.lane.b32.xlu0 %v130, 1
    %v218 = vpop.permute.xlu0 %217
    %219 = vrot.lane.b32.xlu0 %v132, 1
    %v220 = vpop.permute.xlu0 %219
    %221 = vrot.lane.b32.xlu0 %v134, 1
    %v222 = vpop.permute.xlu0 %221
    %223 = vrot.lane.b32.xlu0 %v125, 1
    %v224 = vpop.permute.xlu0 %223
    %225 = vrot.lane.b32.xlu0 %v127, 1
    %v226 = vpop.permute.xlu0 %225
    %227 = vrot.lane.b32.xlu0 %v129, 1
    %v228 = vpop.permute.xlu0 %227
    %229 = vrot.lane.b32.xlu0 %v131, 1
    %v230 = vpop.permute.xlu0 %229
    %231 = vrot.lane.b32.xlu0 %v133, 1
    %v232 = vpop.permute.xlu0 %231
    %233 = vrot.lane.b32.xlu0 %v135, 1
    %v234 = vpop.permute.xlu0 %233
    %vm235 = vcmp.lt.s32.totalorder %v137, 1
    %v236 = vsel %vm235, %v212, %v224
    %v237 = vsel %vm235, %v214, %v226
    %v238 = vsel %vm235, %v216, %v228
    %v239 = vsel %vm235, %v218, %v230
    %v240 = vsel %vm235, %v220, %v232
    %v241 = vsel %vm235, %v222, %v234
    %v242 = vsel %vm235, %v224, %v212
    %v243 = vsel %vm235, %v226, %v214
    %v244 = vsel %vm235, %v228, %v216
    %v245 = vsel %vm235, %v230, %v218
    %v246 = vsel %vm235, %v232, %v220
    %v247 = vsel %vm235, %v234, %v222
    %v248 = vsel %vm185, 1, 0
    %v249 = vsel %vm186, 1, 0
    %vm250 = vcmp.eq.s32.totalorder %v248, 1
    %vm251 = vcmp.eq.s32.totalorder %v249, 1
    %v252 = vsel %vm250, %v242, 0.0
    %v253 = vsel %vm251, %v236, 0.0
    %v254 = vsel %vm250, %v243, 0.0
    %v255 = vsel %vm251, %v237, 0.0
    %v256 = vsel %vm250, %v244, 0.0
    %v257 = vsel %vm251, %v238, 0.0
    %v258 = vsel %vm250, %v245, 0.0
    %v259 = vsel %vm251, %v239, 0.0
    %v260 = vsel %vm250, %v246, 0.0
    %v261 = vsel %vm251, %v240, 0.0
    %v262 = vsel %vm250, %v247, 0.0
    %v263 = vsel %vm251, %v241, 0.0
    %v264 = vpack.c.bf16 %v254, %v252
    %v265 = vpack.c.bf16 %v255, %v253
    %v266 = vpack.c.bf16 %v258, %v256
    %v267 = vpack.c.bf16 %v259, %v257
    %v268 = vpack.c.bf16 %v262, %v260
    %v269 = vpack.c.bf16 %v263, %v261
    %270 = vst [vmem:[#allocation2] sm:$0xff] %v264
    %271 = vst [vmem:[#allocation2 + $0x8] sm:$0xff] %v265
    %272 = vst [vmem:[#allocation2 + $0x10] sm:$0xff] %v266
    %273 = vst [vmem:[#allocation2 + $0x18] sm:$0xff] %v267
    %274 = vst [vmem:[#allocation2 + $0x20] sm:$0xff] %v268
    %275 = vst [vmem:[#allocation2 + $0x28] sm:$0xff] %v269
    %v276 = vpack.c.bf16 %v126, %v124
    %v277 = vpack.c.bf16 %v127, %v125
    %v278 = vpack.c.bf16 %v130, %v128
    %v279 = vpack.c.bf16 %v131, %v129
    %v280 = vpack.c.bf16 %v134, %v132
    %v281 = vpack.c.bf16 %v135, %v133
    %282 = vst [vmem:[#allocation2 + $0x30] sm:$0xff] %v276
    %283 = vst [vmem:[#allocation2 + $0x38] sm:$0xff] %v277
    %284 = vst [vmem:[#allocation2 + $0x40] sm:$0xff] %v278
    %285 = vst [vmem:[#allocation2 + $0x48] sm:$0xff] %v279
    %286 = vst [vmem:[#allocation2 + $0x50] sm:$0xff] %v280
    %287 = vst [vmem:[#allocation2 + $0x58] sm:$0xff] %v281
    %288 = vrot.lane.b32.xlu0 %v124, 127
    %v289 = vpop.permute.xlu0 %288
    %290 = vrot.lane.b32.xlu0 %v126, 127
    %v291 = vpop.permute.xlu0 %290
    %292 = vrot.lane.b32.xlu0 %v128, 127
    %v293 = vpop.permute.xlu0 %292
    %294 = vrot.lane.b32.xlu0 %v130, 127
    %v295 = vpop.permute.xlu0 %294
    %296 = vrot.lane.b32.xlu0 %v132, 127
    %v297 = vpop.permute.xlu0 %296
    %298 = vrot.lane.b32.xlu0 %v134, 127
    %v299 = vpop.permute.xlu0 %298
    %300 = vrot.lane.b32.xlu0 %v125, 127
    %v301 = vpop.permute.xlu0 %300
    %302 = vrot.lane.b32.xlu0 %v127, 127
    %v303 = vpop.permute.xlu0 %302
    %304 = vrot.lane.b32.xlu0 %v129, 127
    %v305 = vpop.permute.xlu0 %304
    %306 = vrot.lane.b32.xlu0 %v131, 127
    %v307 = vpop.permute.xlu0 %306
    %308 = vrot.lane.b32.xlu0 %v133, 127
    %v309 = vpop.permute.xlu0 %308
    %310 = vrot.lane.b32.xlu0 %v135, 127
    %v311 = vpop.permute.xlu0 %310
    %vm312 = vcmp.lt.s32.totalorder %v137, 127
    %v313 = vsel %vm312, %v289, %v301
    %v314 = vsel %vm312, %v291, %v303
    %v315 = vsel %vm312, %v293, %v305
    %v316 = vsel %vm312, %v295, %v307
    %v317 = vsel %vm312, %v297, %v309
    %v318 = vsel %vm312, %v299, %v311
    %v319 = vsel %vm312, %v301, %v289
    %v320 = vsel %vm312, %v303, %v291
    %v321 = vsel %vm312, %v305, %v293
    %v322 = vsel %vm312, %v307, %v295
    %v323 = vsel %vm312, %v309, %v297
    %v324 = vsel %vm312, %v311, %v299
    %v325 = vsel %vm193, 1, 0
    %v326 = vsel %vm194, 1, 0
    %vm327 = vcmp.eq.s32.totalorder %v325, 1
    %vm328 = vcmp.eq.s32.totalorder %v326, 1
    %v329 = vsel %vm327, %v313, 0.0
    %v330 = vsel %vm328, %v319, 0.0
    %v331 = vsel %vm327, %v314, 0.0
    %v332 = vsel %vm328, %v320, 0.0
    %v333 = vsel %vm327, %v315, 0.0
    %v334 = vsel %vm328, %v321, 0.0
    %v335 = vsel %vm327, %v316, 0.0
    %v336 = vsel %vm328, %v322, 0.0
    %v337 = vsel %vm327, %v317, 0.0
    %v338 = vsel %vm328, %v323, 0.0
    %v339 = vsel %vm327, %v318, 0.0
    %v340 = vsel %vm328, %v324, 0.0
    %v341 = vpack.c.bf16 %v331, %v329
    %v342 = vpack.c.bf16 %v332, %v330
    %v343 = vpack.c.bf16 %v335, %v333
    %v344 = vpack.c.bf16 %v336, %v334
    %v345 = vpack.c.bf16 %v339, %v337
    %v346 = vpack.c.bf16 %v340, %v338
    %347 = vst [vmem:[#allocation2 + $0x60] sm:$0xff] %v341
    %348 = vst [vmem:[#allocation2 + $0x68] sm:$0xff] %v342
    %349 = vst [vmem:[#allocation2 + $0x70] sm:$0xff] %v343
    %350 = vst [vmem:[#allocation2 + $0x78] sm:$0xff] %v344
    %351 = vst [vmem:[#allocation2 + $0x80] sm:$0xff] %v345
    %352 = vst [vmem:[#allocation2 + $0x88] sm:$0xff] %v346
    %v353 = vld [vmem:[%s3] sm:$0xff]
    %v354 = vld [vmem:[%s3 + $0x8] sm:$0xff]
    %v355 = vld [vmem:[%s3 + $0x10] sm:$0xff]
    %v356 = vld [vmem:[%s3 + $0x18] sm:$0xff]
    %v357 = vld [vmem:[%s3 + $0x20] sm:$0xff]
    %v358 = vld [vmem:[%s3 + $0x28] sm:$0xff]
    %v359 = vld [vmem:[#allocation2] sm:$0xff]
    %v360 = vld [vmem:[#allocation2 + $0x8] sm:$0xff]
    %v361 = vld [vmem:[#allocation2 + $0x10] sm:$0xff]
    %v362 = vld [vmem:[#allocation2 + $0x18] sm:$0xff]
    %v363 = vld [vmem:[#allocation2 + $0x20] sm:$0xff]
    %v364 = vld [vmem:[#allocation2 + $0x28] sm:$0xff]
    %v365 = vld [vmem:[#allocation2 + $0x30] sm:$0xff]
    %v366 = vld [vmem:[#allocation2 + $0x38] sm:$0xff]
    %v367 = vld [vmem:[#allocation2 + $0x40] sm:$0xff]
    %v368 = vld [vmem:[#allocation2 + $0x48] sm:$0xff]
    %v369 = vld [vmem:[#allocation2 + $0x50] sm:$0xff]
    %v370 = vld [vmem:[#allocation2 + $0x58] sm:$0xff]
    %v371 = vld [vmem:[#allocation2 + $0x60] sm:$0xff]
    %v372 = vld [vmem:[#allocation2 + $0x68] sm:$0xff]
    %v373 = vld [vmem:[#allocation2 + $0x70] sm:$0xff]
    %v374 = vld [vmem:[#allocation2 + $0x78] sm:$0xff]
    %v375 = vld [vmem:[#allocation2 + $0x80] sm:$0xff]
    %v376 = vld [vmem:[#allocation2 + $0x88] sm:$0xff]
    %v377 = vld [vmem:[%s4] sm:$0xff]
    %v378 = vld [vmem:[%s4 + $0x8] sm:$0xff]
    %v379 = vld [vmem:[%s4 + $0x10] sm:$0xff]
    %v380 = vld [vmem:[%s4 + $0x18] sm:$0xff]
    %v381 = vld [vmem:[%s4 + $0x20] sm:$0xff]
    %v382 = vld [vmem:[%s4 + $0x28] sm:$0xff]
    %384 = vset.pattern.permute.xlu0 0
    %385 = vperm.xlu0 %384, %v377
    %v386 = vpop.permute.xlu0 %385
    %389 = vset.pattern.permute.xlu0 0
    %390 = vperm.xlu0 %389, %v378
    %v391 = vpop.permute.xlu0 %390
    %394 = vset.pattern.permute.xlu0 0
    %395 = vperm.xlu0 %394, %v379
    %v396 = vpop.permute.xlu0 %395
    %399 = vset.pattern.permute.xlu0 0
    %400 = vperm.xlu0 %399, %v380
    %v401 = vpop.permute.xlu0 %400
    %404 = vset.pattern.permute.xlu0 0
    %405 = vperm.xlu0 %404, %v381
    %v406 = vpop.permute.xlu0 %405
    %409 = vset.pattern.permute.xlu0 0
    %410 = vperm.xlu0 %409, %v382
    %v411 = vpop.permute.xlu0 %410
    %v419 = vunpack.c.l.b16 %v353
    %v420 = vunpack.c.h.b16 %v353
    %v421 = vunpack.c.l.b16 %v354
    %v422 = vunpack.c.h.b16 %v354
    %v423 = vunpack.c.l.b16 %v355
    %v424 = vunpack.c.h.b16 %v355
    %v425 = vunpack.c.l.b16 %v356
    %v426 = vunpack.c.h.b16 %v356
    %v427 = vunpack.c.l.b16 %v357
    %v428 = vunpack.c.h.b16 %v357
    %v429 = vunpack.c.l.b16 %v358
    %v430 = vunpack.c.h.b16 %v358
    %v431 = vpack.c.b16 %v421, %v419
    %v432 = vpack.c.b16 %v422, %v420
    %v433 = vpack.c.b16 %v425, %v423
    %v434 = vpack.c.b16 %v426, %v424
    %v435 = vpack.c.b16 %v429, %v427
    %v436 = vpack.c.b16 %v430, %v428
    %vm440 = vcmask 130048
    %v442 = vsel %vm440, %v432, 0
    %v445 = vsel %vm440, %v434, 0
    %v448 = vsel %vm440, %v436, 0
    %450 = vmatprep.subr.bf16.mxu0 %v360
    %451 = vmatpush1.bf16.msra.mxu0 %v359
    %452 = vmatprep.subr.bf16.mxu0 %v362
    %453 = vmatpush1.bf16.msra.mxu0 %v361
    %454 = vmatprep.subr.bf16.mxu0 %v364
    %455 = vmatpush1.bf16.msra.mxu0 %v363
    %456 = vmatprep.subr.bf16.mxu0 %v366
    %457 = vmatpush1.bf16.msra.mxu0 %v365
    %458 = vmatprep.subr.bf16.mxu0 %v368
    %459 = vmatpush1.bf16.msra.mxu0 %v367
    %460 = vmatprep.subr.bf16.mxu0 %v370
    %461 = vmatpush1.bf16.msra.mxu0 %v369
    %462 = vmatprep.subr.bf16.mxu0 %v372
    %463 = vmatpush1.bf16.msra.mxu0 %v371
    %464 = vmatprep.subr.bf16.mxu0 %v374
    %465 = vmatpush1.bf16.msra.mxu0 %v373
    %466 = vmatprep.subr.bf16.mxu0 %v376
    %467 = vmatpush1.bf16.msra.mxu0 %v375
    %468 = vmatprep.subr.bf16.mxu0 0
    %469 = vmatpush1.bf16.msra.mxu0 0
    %470 = vmatprep.subr.bf16.mxu0 0
    %471 = vmatpush1.bf16.msra.mxu0 0
    %472 = vmatprep.subr.bf16.mxu0 0
    %473 = vmatpush1.bf16.msra.mxu0 0
    %474 = vmatprep.subr.bf16.mxu0 0
    %475 = vmatpush1.bf16.msra.mxu0 0
    %476 = vmatprep.subr.bf16.mxu0 0
    %477 = vmatpush1.bf16.msra.mxu0 0
    %478 = vmatprep.subr.bf16.mxu0 0
    %479 = vmatpush1.bf16.msra.mxu0 0
    %480 = vmatprep.subr.bf16.mxu0 0
    %481 = vmatpush1.bf16.msra.mxu0 0
    %482 = vmatprep.mubr.bf16.mxu0 %v442
    %483 = vmatmul.mubr.bf16.gmra.mrb[0].mxu0 %v431
    %v484 = vpop.f32.mrb[0].mxu0
    %v485 = vadd.f32 %v386, %v484
    %v486 = vpop.f32.mrb[0].mxu0
    %v487 = vadd.f32 %v386, %v486
    %v488 = vpop.f32.mrb[0].mxu0
    %v489 = vadd.f32 %v391, %v488
    %v490 = vpop.f32.mrb[0].mxu0
    %v491 = vadd.f32 %v391, %v490
    %492 = vmatprep.mubr.bf16.mxu0 %v445
    %493 = vmatmul.mubr.bf16.gmra.mrb[0].mxu0 %v433
    %v494 = vpop.f32.mrb[0].mxu0
    %v495 = vadd.f32 %v396, %v494
    %v496 = vpop.f32.mrb[0].mxu0
    %v497 = vadd.f32 %v396, %v496
    %v498 = vpop.f32.mrb[0].mxu0
    %v499 = vadd.f32 %v401, %v498
    %v500 = vpop.f32.mrb[0].mxu0
    %v501 = vadd.f32 %v401, %v500
    %502 = vmatprep.mubr.bf16.mxu0 %v448
    %503 = vmatmul.mubr.bf16.gmra.mrb[0].mxu0 %v435
    %v504 = vpop.f32.mrb[0].mxu0
    %v505 = vadd.f32 %v406, %v504
    %v506 = vpop.f32.mrb[0].mxu0
    %v507 = vadd.f32 %v406, %v506
    %v508 = vpop.f32.mrb[0].mxu0
    %v509 = vadd.f32 %v411, %v508
    %v510 = vpop.f32.mrb[0].mxu0
    %v511 = vadd.f32 %v411, %v510
    %512 = vdwg.mxu0
    %v513 = vmax.f32 %v485, 0.0
    %v514 = vmax.f32 %v487, 0.0
    %v515 = vmax.f32 %v489, 0.0
    %v516 = vmax.f32 %v491, 0.0
    %v517 = vmax.f32 %v495, 0.0
    %v518 = vmax.f32 %v497, 0.0
    %v519 = vmax.f32 %v499, 0.0
    %v520 = vmax.f32 %v501, 0.0
    %v521 = vmax.f32 %v505, 0.0
    %v522 = vmax.f32 %v507, 0.0
    %v523 = vmax.f32 %v509, 0.0
    %v524 = vmax.f32 %v511, 0.0
    %v525 = vadd.f32 %v513, %v124
    %v526 = vadd.f32 %v514, %v125
    %v527 = vadd.f32 %v515, %v126
    %v528 = vadd.f32 %v516, %v127
    %v529 = vadd.f32 %v517, %v128
    %v530 = vadd.f32 %v518, %v129
    %v531 = vadd.f32 %v519, %v130
    %v532 = vadd.f32 %v520, %v131
    %v533 = vadd.f32 %v521, %v132
    %v534 = vadd.f32 %v522, %v133
    %v535 = vadd.f32 %v523, %v134
    %v536 = vadd.f32 %v524, %v135
    %v537 = vadd.f32 %v525, %v526
    %538 = vadd.xlane.f32.xlu0 %v537
    %v539 = vpop.xlane.xlu0 %538
    %v540 = vadd.f32 %v527, %v528
    %541 = vadd.xlane.f32.xlu0 %v540
    %v542 = vpop.xlane.xlu0 %541
    %v543 = vadd.f32 %v529, %v530
    %544 = vadd.xlane.f32.xlu0 %v543
    %v545 = vpop.xlane.xlu0 %544
    %v546 = vadd.f32 %v531, %v532
    %547 = vadd.xlane.f32.xlu0 %v546
    %v548 = vpop.xlane.xlu0 %547
    %v549 = vadd.f32 %v533, %v534
    %550 = vadd.xlane.f32.xlu0 %v549
    %v551 = vpop.xlane.xlu0 %550
    %v552 = vadd.f32 %v535, %v536
    %553 = vadd.xlane.f32.xlu0 %v552
    %v554 = vpop.xlane.xlu0 %553
    %v555 = vmul.f32 %v525, %v525
    %v556 = vmul.f32 %v526, %v526
    %v557 = vmul.f32 %v527, %v527
    %v558 = vmul.f32 %v528, %v528
    %v559 = vmul.f32 %v529, %v529
    %v560 = vmul.f32 %v530, %v530
    %v561 = vmul.f32 %v531, %v531
    %v562 = vmul.f32 %v532, %v532
    %v563 = vmul.f32 %v533, %v533
    %v564 = vmul.f32 %v534, %v534
    %v565 = vmul.f32 %v535, %v535
    %v566 = vmul.f32 %v536, %v536
    %v567 = vadd.f32 %v555, %v556
    %568 = vadd.xlane.f32.xlu0 %v567
    %v569 = vpop.xlane.xlu0 %568
    %v570 = vadd.f32 %v557, %v558
    %571 = vadd.xlane.f32.xlu0 %v570
    %v572 = vpop.xlane.xlu0 %571
    %v573 = vadd.f32 %v559, %v560
    %574 = vadd.xlane.f32.xlu0 %v573
    %v575 = vpop.xlane.xlu0 %574
    %v576 = vadd.f32 %v561, %v562
    %577 = vadd.xlane.f32.xlu0 %v576
    %v578 = vpop.xlane.xlu0 %577
    %v579 = vadd.f32 %v563, %v564
    %580 = vadd.xlane.f32.xlu0 %v579
    %v581 = vpop.xlane.xlu0 %580
    %v582 = vadd.f32 %v565, %v566
    %583 = vadd.xlane.f32.xlu0 %v582
    %v584 = vpop.xlane.xlu0 %583
    %v585 = vmul.f32 %v539, 0.00390625
    %v586 = vmul.f32 %v542, 0.00390625
    %v587 = vmul.f32 %v545, 0.00390625
    %v588 = vmul.f32 %v548, 0.00390625
    %v589 = vmul.f32 %v551, 0.00390625
    %v590 = vmul.f32 %v554, 0.00390625
    %v591 = vmul.f32 %v569, 0.00390625
    %v592 = vmul.f32 %v572, 0.00390625
    %v593 = vmul.f32 %v575, 0.00390625
    %v594 = vmul.f32 %v578, 0.00390625
    %v595 = vmul.f32 %v581, 0.00390625
    %v596 = vmul.f32 %v584, 0.00390625
    %v597 = vmul.f32 %v585, %v585
    %v598 = vmul.f32 %v586, %v586
    %v599 = vmul.f32 %v587, %v587
    %v600 = vmul.f32 %v588, %v588
    %v601 = vmul.f32 %v589, %v589
    %v602 = vmul.f32 %v590, %v590
    %v603 = vsub.f32 %v591, %v597
    %v604 = vsub.f32 %v592, %v598
    %v605 = vsub.f32 %v593, %v599
    %v606 = vsub.f32 %v594, %v600
    %v607 = vsub.f32 %v595, %v601
    %v608 = vsub.f32 %v596, %v602
    %v609 = vld [vmem:[%s5] sm:$0xff]
    %v610 = vld [vmem:[%s5 + $0x8] sm:$0xff]
    %v611 = vld [vmem:[%s5 + $0x10] sm:$0xff]
    %v612 = vld [vmem:[%s5 + $0x18] sm:$0xff]
    %v613 = vld [vmem:[%s5 + $0x20] sm:$0xff]
    %v614 = vld [vmem:[%s5 + $0x28] sm:$0xff]
    %v615 = vadd.f32 %v603, 1e-05
    %v616 = vadd.f32 %v604, 1e-05
    %v617 = vadd.f32 %v605, 1e-05
    %v618 = vadd.f32 %v606, 1e-05
    %v619 = vadd.f32 %v607, 1e-05
    %v620 = vadd.f32 %v608, 1e-05
    %v621 = vrsqrt.pop %v615
    %v622 = vrsqrt.pop %v616
    %v623 = vrsqrt.pop %v617
    %v624 = vrsqrt.pop %v618
    %v625 = vrsqrt.pop %v619
    %v626 = vrsqrt.pop %v620
    %v627 = vmul.f32 %v609, %v621
    %v628 = vmul.f32 %v610, %v622
    %v629 = vmul.f32 %v611, %v623
    %v630 = vmul.f32 %v612, %v624
    %v631 = vmul.f32 %v613, %v625
    %v632 = vmul.f32 %v614, %v626
    %v633 = vld [vmem:[%s6] sm:$0xff]
    %v634 = vld [vmem:[%s6 + $0x8] sm:$0xff]
    %v635 = vld [vmem:[%s6 + $0x10] sm:$0xff]
    %v636 = vld [vmem:[%s6 + $0x18] sm:$0xff]
    %v637 = vld [vmem:[%s6 + $0x20] sm:$0xff]
    %v638 = vld [vmem:[%s6 + $0x28] sm:$0xff]
    %v639 = vmul.f32 %v585, %v627
    %v640 = vmul.f32 %v586, %v628
    %v641 = vmul.f32 %v587, %v629
    %v642 = vmul.f32 %v588, %v630
    %v643 = vmul.f32 %v589, %v631
    %v644 = vmul.f32 %v590, %v632
    %v645 = vsub.f32 %v633, %v639
    %v646 = vsub.f32 %v634, %v640
    %v647 = vsub.f32 %v635, %v641
    %v648 = vsub.f32 %v636, %v642
    %v649 = vsub.f32 %v637, %v643
    %v650 = vsub.f32 %v638, %v644
    %652 = vset.pattern.permute.xlu0 0
    %653 = vperm.xlu0 %652, %v627
    %v654 = vpop.permute.xlu0 %653
    %657 = vset.pattern.permute.xlu0 0
    %658 = vperm.xlu0 %657, %v628
    %v659 = vpop.permute.xlu0 %658
    %662 = vset.pattern.permute.xlu0 0
    %663 = vperm.xlu0 %662, %v629
    %v664 = vpop.permute.xlu0 %663
    %667 = vset.pattern.permute.xlu0 0
    %668 = vperm.xlu0 %667, %v630
    %v669 = vpop.permute.xlu0 %668
    %672 = vset.pattern.permute.xlu0 0
    %673 = vperm.xlu0 %672, %v631
    %v674 = vpop.permute.xlu0 %673
    %677 = vset.pattern.permute.xlu0 0
    %678 = vperm.xlu0 %677, %v632
    %v679 = vpop.permute.xlu0 %678
    %v681 = vmul.f32 %v654, %v525
    %v682 = vmul.f32 %v654, %v526
    %v683 = vmul.f32 %v659, %v527
    %v684 = vmul.f32 %v659, %v528
    %v685 = vmul.f32 %v664, %v529
    %v686 = vmul.f32 %v664, %v530
    %v687 = vmul.f32 %v669, %v531
    %v688 = vmul.f32 %v669, %v532
    %v689 = vmul.f32 %v674, %v533
    %v690 = vmul.f32 %v674, %v534
    %v691 = vmul.f32 %v679, %v535
    %v692 = vmul.f32 %v679, %v536
    %694 = vset.pattern.permute.xlu0 0
    %695 = vperm.xlu0 %694, %v645
    %v696 = vpop.permute.xlu0 %695
    %699 = vset.pattern.permute.xlu0 0
    %700 = vperm.xlu0 %699, %v646
    %v701 = vpop.permute.xlu0 %700
    %704 = vset.pattern.permute.xlu0 0
    %705 = vperm.xlu0 %704, %v647
    %v706 = vpop.permute.xlu0 %705
    %709 = vset.pattern.permute.xlu0 0
    %710 = vperm.xlu0 %709, %v648
    %v711 = vpop.permute.xlu0 %710
    %714 = vset.pattern.permute.xlu0 0
    %715 = vperm.xlu0 %714, %v649
    %v716 = vpop.permute.xlu0 %715
    %719 = vset.pattern.permute.xlu0 0
    %720 = vperm.xlu0 %719, %v650
    %v721 = vpop.permute.xlu0 %720
    %v723 = vadd.f32 %v681, %v696
    %v724 = vadd.f32 %v682, %v696
    %v725 = vadd.f32 %v683, %v701
    %v726 = vadd.f32 %v684, %v701
    %v727 = vadd.f32 %v685, %v706
    %v728 = vadd.f32 %v686, %v706
    %v729 = vadd.f32 %v687, %v711
    %v730 = vadd.f32 %v688, %v711
    %v731 = vadd.f32 %v689, %v716
    %v732 = vadd.f32 %v690, %v716
    %v733 = vadd.f32 %v691, %v721
    %v734 = vadd.f32 %v692, %v721
    %735 = vrot.lane.b32.xlu0 %v723, 2
    %v736 = vpop.permute.xlu0 %735
    %737 = vrot.lane.b32.xlu0 %v725, 2
    %v738 = vpop.permute.xlu0 %737
    %739 = vrot.lane.b32.xlu0 %v727, 2
    %v740 = vpop.permute.xlu0 %739
    %741 = vrot.lane.b32.xlu0 %v729, 2
    %v742 = vpop.permute.xlu0 %741
    %743 = vrot.lane.b32.xlu0 %v731, 2
    %v744 = vpop.permute.xlu0 %743
    %745 = vrot.lane.b32.xlu0 %v733, 2
    %v746 = vpop.permute.xlu0 %745
    %747 = vrot.lane.b32.xlu0 %v724, 2
    %v748 = vpop.permute.xlu0 %747
    %749 = vrot.lane.b32.xlu0 %v726, 2
    %v750 = vpop.permute.xlu0 %749
    %751 = vrot.lane.b32.xlu0 %v728, 2
    %v752 = vpop.permute.xlu0 %751
    %753 = vrot.lane.b32.xlu0 %v730, 2
    %v754 = vpop.permute.xlu0 %753
    %755 = vrot.lane.b32.xlu0 %v732, 2
    %v756 = vpop.permute.xlu0 %755
    %757 = vrot.lane.b32.xlu0 %v734, 2
    %v758 = vpop.permute.xlu0 %757
    %vm759 = vcmp.lt.s32.totalorder %v137, 2
    %v760 = vsel %vm759, %v736, %v748
    %v761 = vsel %vm759, %v738, %v750
    %v762 = vsel %vm759, %v740, %v752
    %v763 = vsel %vm759, %v742, %v754
    %v764 = vsel %vm759, %v744, %v756
    %v765 = vsel %vm759, %v746, %v758
    %v766 = vsel %vm759, %v748, %v736
    %v767 = vsel %vm759, %v750, %v738
    %v768 = vsel %vm759, %v752, %v740
    %v769 = vsel %vm759, %v754, %v742
    %v770 = vsel %vm759, %v756, %v744
    %v771 = vsel %vm759, %v758, %v746
    %v772 = vsel %vm177, 1, 0
    %v773 = vsel %vm178, 1, 0
    %vm774 = vcmp.eq.s32.totalorder %v772, 1
    %vm775 = vcmp.eq.s32.totalorder %v773, 1
    %v776 = vsel %vm774, %v766, 0.0
    %v777 = vsel %vm775, %v760, 0.0
    %v778 = vsel %vm774, %v767, 0.0
    %v779 = vsel %vm775, %v761, 0.0
    %v780 = vsel %vm774, %v768, 0.0
    %v781 = vsel %vm775, %v762, 0.0
    %v782 = vsel %vm774, %v769, 0.0
    %v783 = vsel %vm775, %v763, 0.0
    %v784 = vsel %vm774, %v770, 0.0
    %v785 = vsel %vm775, %v764, 0.0
    %v786 = vsel %vm774, %v771, 0.0
    %v787 = vsel %vm775, %v765, 0.0
    %v788 = vpack.c.bf16 %v778, %v776
    %v789 = vpack.c.bf16 %v779, %v777
    %v790 = vpack.c.bf16 %v782, %v780
    %v791 = vpack.c.bf16 %v783, %v781
    %v792 = vpack.c.bf16 %v786, %v784
    %v793 = vpack.c.bf16 %v787, %v785
    %794 = vst [vmem:[#allocation2] sm:$0xff] %v788
    %795 = vst [vmem:[#allocation2 + $0x8] sm:$0xff] %v789
    %796 = vst [vmem:[#allocation2 + $0x10] sm:$0xff] %v790
    %797 = vst [vmem:[#allocation2 + $0x18] sm:$0xff] %v791
    %798 = vst [vmem:[#allocation2 + $0x20] sm:$0xff] %v792
    %799 = vst [vmem:[#allocation2 + $0x28] sm:$0xff] %v793
    %v800 = vpack.c.bf16 %v725, %v723
    %v801 = vpack.c.bf16 %v726, %v724
    %v802 = vpack.c.bf16 %v729, %v727
    %v803 = vpack.c.bf16 %v730, %v728
    %v804 = vpack.c.bf16 %v733, %v731
    %v805 = vpack.c.bf16 %v734, %v732
    %806 = vst [vmem:[#allocation2 + $0x30] sm:$0xff] %v800
    %807 = vst [vmem:[#allocation2 + $0x38] sm:$0xff] %v801
    %808 = vst [vmem:[#allocation2 + $0x40] sm:$0xff] %v802
    %809 = vst [vmem:[#allocation2 + $0x48] sm:$0xff] %v803
    %810 = vst [vmem:[#allocation2 + $0x50] sm:$0xff] %v804
    %811 = vst [vmem:[#allocation2 + $0x58] sm:$0xff] %v805
    %812 = vrot.lane.b32.xlu0 %v723, 126
    %v813 = vpop.permute.xlu0 %812
    %814 = vrot.lane.b32.xlu0 %v725, 126
    %v815 = vpop.permute.xlu0 %814
    %816 = vrot.lane.b32.xlu0 %v727, 126
    %v817 = vpop.permute.xlu0 %816
    %818 = vrot.lane.b32.xlu0 %v729, 126
    %v819 = vpop.permute.xlu0 %818
    %820 = vrot.lane.b32.xlu0 %v731, 126
    %v821 = vpop.permute.xlu0 %820
    %822 = vrot.lane.b32.xlu0 %v733, 126
    %v823 = vpop.permute.xlu0 %822
    %824 = vrot.lane.b32.xlu0 %v724, 126
    %v825 = vpop.permute.xlu0 %824
    %826 = vrot.lane.b32.xlu0 %v726, 126
    %v827 = vpop.permute.xlu0 %826
    %828 = vrot.lane.b32.xlu0 %v728, 126
    %v829 = vpop.permute.xlu0 %828
    %830 = vrot.lane.b32.xlu0 %v730, 126
    %v831 = vpop.permute.xlu0 %830
    %832 = vrot.lane.b32.xlu0 %v732, 126
    %v833 = vpop.permute.xlu0 %832
    %834 = vrot.lane.b32.xlu0 %v734, 126
    %v835 = vpop.permute.xlu0 %834
    %vm836 = vcmp.lt.s32.totalorder %v137, 126
    %v837 = vsel %vm836, %v813, %v825
    %v838 = vsel %vm836, %v815, %v827
    %v839 = vsel %vm836, %v817, %v829
    %v840 = vsel %vm836, %v819, %v831
    %v841 = vsel %vm836, %v821, %v833
    %v842 = vsel %vm836, %v823, %v835
    %v843 = vsel %vm836, %v825, %v813
    %v844 = vsel %vm836, %v827, %v815
    %v845 = vsel %vm836, %v829, %v817
    %v846 = vsel %vm836, %v831, %v819
    %v847 = vsel %vm836, %v833, %v821
    %v848 = vsel %vm836, %v835, %v823
    %v849 = vsel %vm201, 1, 0
    %v850 = vsel %vm202, 1, 0
    %vm851 = vcmp.eq.s32.totalorder %v849, 1
    %vm852 = vcmp.eq.s32.totalorder %v850, 1
    %v853 = vsel %vm851, %v837, 0.0
    %v854 = vsel %vm852, %v843, 0.0
    %v855 = vsel %vm851, %v838, 0.0
    %v856 = vsel %vm852, %v844, 0.0
    %v857 = vsel %vm851, %v839, 0.0
    %v858 = vsel %vm852, %v845, 0.0
    %v859 = vsel %vm851, %v840, 0.0
    %v860 = vsel %vm852, %v846, 0.0
    %v861 = vsel %vm851, %v841, 0.0
    %v862 = vsel %vm852, %v847, 0.0
    %v863 = vsel %vm851, %v842, 0.0
    %v864 = vsel %vm852, %v848, 0.0
    %v865 = vpack.c.bf16 %v855, %v853
    %v866 = vpack.c.bf16 %v856, %v854
    %v867 = vpack.c.bf16 %v859, %v857
    %v868 = vpack.c.bf16 %v860, %v858
    %v869 = vpack.c.bf16 %v863, %v861
    %v870 = vpack.c.bf16 %v864, %v862
    %871 = vst [vmem:[#allocation2 + $0x60] sm:$0xff] %v865
    %872 = vst [vmem:[#allocation2 + $0x68] sm:$0xff] %v866
    %873 = vst [vmem:[#allocation2 + $0x70] sm:$0xff] %v867
    %874 = vst [vmem:[#allocation2 + $0x78] sm:$0xff] %v868
    %875 = vst [vmem:[#allocation2 + $0x80] sm:$0xff] %v869
    %876 = vst [vmem:[#allocation2 + $0x88] sm:$0xff] %v870
    %s877 = scalar_lea.vmem %s3, 48
    %v878 = vld [vmem:[%s877] sm:$0xff]
    %v879 = vld [vmem:[%s877 + $0x8] sm:$0xff]
    %v880 = vld [vmem:[%s877 + $0x10] sm:$0xff]
    %v881 = vld [vmem:[%s877 + $0x18] sm:$0xff]
    %v882 = vld [vmem:[%s877 + $0x20] sm:$0xff]
    %v883 = vld [vmem:[%s877 + $0x28] sm:$0xff]
    %v884 = vld [vmem:[#allocation2] sm:$0xff]
    %v885 = vld [vmem:[#allocation2 + $0x8] sm:$0xff]
    %v886 = vld [vmem:[#allocation2 + $0x10] sm:$0xff]
    %v887 = vld [vmem:[#allocation2 + $0x18] sm:$0xff]
    %v888 = vld [vmem:[#allocation2 + $0x20] sm:$0xff]
    %v889 = vld [vmem:[#allocation2 + $0x28] sm:$0xff]
    %v890 = vld [vmem:[#allocation2 + $0x30] sm:$0xff]
    %v891 = vld [vmem:[#allocation2 + $0x38] sm:$0xff]
    %v892 = vld [vmem:[#allocation2 + $0x40] sm:$0xff]
    %v893 = vld [vmem:[#allocation2 + $0x48] sm:$0xff]
    %v894 = vld [vmem:[#allocation2 + $0x50] sm:$0xff]
    %v895 = vld [vmem:[#allocation2 + $0x58] sm:$0xff]
    %v896 = vld [vmem:[#allocation2 + $0x60] sm:$0xff]
    %v897 = vld [vmem:[#allocation2 + $0x68] sm:$0xff]
    %v898 = vld [vmem:[#allocation2 + $0x70] sm:$0xff]
    %v899 = vld [vmem:[#allocation2 + $0x78] sm:$0xff]
    %v900 = vld [vmem:[#allocation2 + $0x80] sm:$0xff]
    %v901 = vld [vmem:[#allocation2 + $0x88] sm:$0xff]
    %s902 = scalar_lea.vmem %s4, 48
    %v903 = vld [vmem:[%s902] sm:$0xff]
    %v904 = vld [vmem:[%s902 + $0x8] sm:$0xff]
    %v905 = vld [vmem:[%s902 + $0x10] sm:$0xff]
    %v906 = vld [vmem:[%s902 + $0x18] sm:$0xff]
    %v907 = vld [vmem:[%s902 + $0x20] sm:$0xff]
    %v908 = vld [vmem:[%s902 + $0x28] sm:$0xff]
    %910 = vset.pattern.permute.xlu0 0
    %911 = vperm.xlu0 %910, %v903
    %v912 = vpop.permute.xlu0 %911
    %915 = vset.pattern.permute.xlu0 0
    %916 = vperm.xlu0 %915, %v904
    %v917 = vpop.permute.xlu0 %916
    %920 = vset.pattern.permute.xlu0 0
    %921 = vperm.xlu0 %920, %v905
    %v922 = vpop.permute.xlu0 %921
    %925 = vset.pattern.permute.xlu0 0
    %926 = vperm.xlu0 %925, %v906
    %v927 = vpop.permute.xlu0 %926
    %930 = vset.pattern.permute.xlu0 0
    %931 = vperm.xlu0 %930, %v907
    %v932 = vpop.permute.xlu0 %931
    %935 = vset.pattern.permute.xlu0 0
    %936 = vperm.xlu0 %935, %v908
    %v937 = vpop.permute.xlu0 %936
    %v945 = vunpack.c.l.b16 %v878
    %v946 = vunpack.c.h.b16 %v878
    %v947 = vunpack.c.l.b16 %v879
    %v948 = vunpack.c.h.b16 %v879
    %v949 = vunpack.c.l.b16 %v880
    %v950 = vunpack.c.h.b16 %v880
    %v951 = vunpack.c.l.b16 %v881
    %v952 = vunpack.c.h.b16 %v881
    %v953 = vunpack.c.l.b16 %v882
    %v954 = vunpack.c.h.b16 %v882
    %v955 = vunpack.c.l.b16 %v883
    %v956 = vunpack.c.h.b16 %v883
    %v957 = vpack.c.b16 %v947, %v945
    %v958 = vpack.c.b16 %v948, %v946
    %v959 = vpack.c.b16 %v951, %v949
    %v960 = vpack.c.b16 %v952, %v950
    %v961 = vpack.c.b16 %v955, %v953
    %v962 = vpack.c.b16 %v956, %v954
    %v967 = vsel %vm440, %v958, 0
    %v970 = vsel %vm440, %v960, 0
    %v973 = vsel %vm440, %v962, 0
    %975 = vmatprep.subr.bf16.mxu0 %v885
    %976 = vmatpush1.bf16.msra.mxu0 %v884
    %977 = vmatprep.subr.bf16.mxu0 %v887
    %978 = vmatpush1.bf16.msra.mxu0 %v886
    %979 = vmatprep.subr.bf16.mxu0 %v889
    %980 = vmatpush1.bf16.msra.mxu0 %v888
    %981 = vmatprep.subr.bf16.mxu0 %v891
    %982 = vmatpush1.bf16.msra.mxu0 %v890
    %983 = vmatprep.subr.bf16.mxu0 %v893
    %984 = vmatpush1.bf16.msra.mxu0 %v892
    %985 = vmatprep.subr.bf16.mxu0 %v895
    %986 = vmatpush1.bf16.msra.mxu0 %v894
    %987 = vmatprep.subr.bf16.mxu0 %v897
    %988 = vmatpush1.bf16.msra.mxu0 %v896
    %989 = vmatprep.subr.bf16.mxu0 %v899
    %990 = vmatpush1.bf16.msra.mxu0 %v898
    %991 = vmatprep.subr.bf16.mxu0 %v901
    %992 = vmatpush1.bf16.msra.mxu0 %v900
    %993 = vmatprep.subr.bf16.mxu0 0
    %994 = vmatpush1.bf16.msra.mxu0 0
    %995 = vmatprep.subr.bf16.mxu0 0
    %996 = vmatpush1.bf16.msra.mxu0 0
    %997 = vmatprep.subr.bf16.mxu0 0
    %998 = vmatpush1.bf16.msra.mxu0 0
    %999 = vmatprep.subr.bf16.mxu0 0
    %1000 = vmatpush1.bf16.msra.mxu0 0
    %1001 = vmatprep.subr.bf16.mxu0 0
    %1002 = vmatpush1.bf16.msra.mxu0 0
    %1003 = vmatprep.subr.bf16.mxu0 0
    %1004 = vmatpush1.bf16.msra.mxu0 0
    %1005 = vmatprep.subr.bf16.mxu0 0
    %1006 = vmatpush1.bf16.msra.mxu0 0
    %1007 = vmatprep.mubr.bf16.mxu0 %v967
    %1008 = vmatmul.mubr.bf16.gmra.mrb[0].mxu0 %v957
    %v1009 = vpop.f32.mrb[0].mxu0
    %v1010 = vadd.f32 %v912, %v1009
    %v1011 = vpop.f32.mrb[0].mxu0
    %v1012 = vadd.f32 %v912, %v1011
    %v1013 = vpop.f32.mrb[0].mxu0
    %v1014 = vadd.f32 %v917, %v1013
    %v1015 = vpop.f32.mrb[0].mxu0
    %v1016 = vadd.f32 %v917, %v1015
    %1017 = vmatprep.mubr.bf16.mxu0 %v970
    %1018 = vmatmul.mubr.bf16.gmra.mrb[0].mxu0 %v959
    %v1019 = vpop.f32.mrb[0].mxu0
    %v1020 = vadd.f32 %v922, %v1019
    %v1021 = vpop.f32.mrb[0].mxu0
    %v1022 = vadd.f32 %v922, %v1021
    %v1023 = vpop.f32.mrb[0].mxu0
    %v1024 = vadd.f32 %v927, %v1023
    %v1025 = vpop.f32.mrb[0].mxu0
    %v1026 = vadd.f32 %v927, %v1025
    %1027 = vmatprep.mubr.bf16.mxu0 %v973
    %1028 = vmatmul.mubr.bf16.gmra.mrb[0].mxu0 %v961
    %v1029 = vpop.f32.mrb[0].mxu0
    %v1030 = vadd.f32 %v932, %v1029
    %v1031 = vpop.f32.mrb[0].mxu0
    %v1032 = vadd.f32 %v932, %v1031
    %v1033 = vpop.f32.mrb[0].mxu0
    %v1034 = vadd.f32 %v937, %v1033
    %v1035 = vpop.f32.mrb[0].mxu0
    %v1036 = vadd.f32 %v937, %v1035
    %1037 = vdwg.mxu0
    %v1038 = vmax.f32 %v1010, 0.0
    %v1039 = vmax.f32 %v1012, 0.0
    %v1040 = vmax.f32 %v1014, 0.0
    %v1041 = vmax.f32 %v1016, 0.0
    %v1042 = vmax.f32 %v1020, 0.0
    %v1043 = vmax.f32 %v1022, 0.0
    %v1044 = vmax.f32 %v1024, 0.0
    %v1045 = vmax.f32 %v1026, 0.0
    %v1046 = vmax.f32 %v1030, 0.0
    %v1047 = vmax.f32 %v1032, 0.0
    %v1048 = vmax.f32 %v1034, 0.0
    %v1049 = vmax.f32 %v1036, 0.0
    %v1050 = vadd.f32 %v1038, %v723
    %v1051 = vadd.f32 %v1039, %v724
    %v1052 = vadd.f32 %v1040, %v725
    %v1053 = vadd.f32 %v1041, %v726
    %v1054 = vadd.f32 %v1042, %v727
    %v1055 = vadd.f32 %v1043, %v728
    %v1056 = vadd.f32 %v1044, %v729
    %v1057 = vadd.f32 %v1045, %v730
    %v1058 = vadd.f32 %v1046, %v731
    %v1059 = vadd.f32 %v1047, %v732
    %v1060 = vadd.f32 %v1048, %v733
    %v1061 = vadd.f32 %v1049, %v734
    %v1062 = vadd.f32 %v1050, %v1051
    %1063 = vadd.xlane.f32.xlu0 %v1062
    %v1064 = vpop.xlane.xlu0 %1063
    %v1065 = vadd.f32 %v1052, %v1053
    %1066 = vadd.xlane.f32.xlu0 %v1065
    %v1067 = vpop.xlane.xlu0 %1066
    %v1068 = vadd.f32 %v1054, %v1055
    %1069 = vadd.xlane.f32.xlu0 %v1068
    %v1070 = vpop.xlane.xlu0 %1069
    %v1071 = vadd.f32 %v1056, %v1057
    %1072 = vadd.xlane.f32.xlu0 %v1071
    %v1073 = vpop.xlane.xlu0 %1072
    %v1074 = vadd.f32 %v1058, %v1059
    %1075 = vadd.xlane.f32.xlu0 %v1074
    %v1076 = vpop.xlane.xlu0 %1075
    %v1077 = vadd.f32 %v1060, %v1061
    %1078 = vadd.xlane.f32.xlu0 %v1077
    %v1079 = vpop.xlane.xlu0 %1078
    %v1080 = vmul.f32 %v1050, %v1050
    %v1081 = vmul.f32 %v1051, %v1051
    %v1082 = vmul.f32 %v1052, %v1052
    %v1083 = vmul.f32 %v1053, %v1053
    %v1084 = vmul.f32 %v1054, %v1054
    %v1085 = vmul.f32 %v1055, %v1055
    %v1086 = vmul.f32 %v1056, %v1056
    %v1087 = vmul.f32 %v1057, %v1057
    %v1088 = vmul.f32 %v1058, %v1058
    %v1089 = vmul.f32 %v1059, %v1059
    %v1090 = vmul.f32 %v1060, %v1060
    %v1091 = vmul.f32 %v1061, %v1061
    %v1092 = vadd.f32 %v1080, %v1081
    %1093 = vadd.xlane.f32.xlu0 %v1092
    %v1094 = vpop.xlane.xlu0 %1093
    %v1095 = vadd.f32 %v1082, %v1083
    %1096 = vadd.xlane.f32.xlu0 %v1095
    %v1097 = vpop.xlane.xlu0 %1096
    %v1098 = vadd.f32 %v1084, %v1085
    %1099 = vadd.xlane.f32.xlu0 %v1098
    %v1100 = vpop.xlane.xlu0 %1099
    %v1101 = vadd.f32 %v1086, %v1087
    %1102 = vadd.xlane.f32.xlu0 %v1101
    %v1103 = vpop.xlane.xlu0 %1102
    %v1104 = vadd.f32 %v1088, %v1089
    %1105 = vadd.xlane.f32.xlu0 %v1104
    %v1106 = vpop.xlane.xlu0 %1105
    %v1107 = vadd.f32 %v1090, %v1091
    %1108 = vadd.xlane.f32.xlu0 %v1107
    %v1109 = vpop.xlane.xlu0 %1108
    %v1110 = vmul.f32 %v1064, 0.00390625
    %v1111 = vmul.f32 %v1067, 0.00390625
    %v1112 = vmul.f32 %v1070, 0.00390625
    %v1113 = vmul.f32 %v1073, 0.00390625
    %v1114 = vmul.f32 %v1076, 0.00390625
    %v1115 = vmul.f32 %v1079, 0.00390625
    %v1116 = vmul.f32 %v1094, 0.00390625
    %v1117 = vmul.f32 %v1097, 0.00390625
    %v1118 = vmul.f32 %v1100, 0.00390625
    %v1119 = vmul.f32 %v1103, 0.00390625
    %v1120 = vmul.f32 %v1106, 0.00390625
    %v1121 = vmul.f32 %v1109, 0.00390625
    %v1122 = vmul.f32 %v1110, %v1110
    %v1123 = vmul.f32 %v1111, %v1111
    %v1124 = vmul.f32 %v1112, %v1112
    %v1125 = vmul.f32 %v1113, %v1113
    %v1126 = vmul.f32 %v1114, %v1114
    %v1127 = vmul.f32 %v1115, %v1115
    %v1128 = vsub.f32 %v1116, %v1122
    %v1129 = vsub.f32 %v1117, %v1123
    %v1130 = vsub.f32 %v1118, %v1124
    %v1131 = vsub.f32 %v1119, %v1125
    %v1132 = vsub.f32 %v1120, %v1126
    %v1133 = vsub.f32 %v1121, %v1127
    %s1134 = scalar_lea.vmem %s5, 48
    %v1135 = vld [vmem:[%s1134] sm:$0xff]
    %v1136 = vld [vmem:[%s1134 + $0x8] sm:$0xff]
    %v1137 = vld [vmem:[%s1134 + $0x10] sm:$0xff]
    %v1138 = vld [vmem:[%s1134 + $0x18] sm:$0xff]
    %v1139 = vld [vmem:[%s1134 + $0x20] sm:$0xff]
    %v1140 = vld [vmem:[%s1134 + $0x28] sm:$0xff]
    %v1141 = vadd.f32 %v1128, 1e-05
    %v1142 = vadd.f32 %v1129, 1e-05
    %v1143 = vadd.f32 %v1130, 1e-05
    %v1144 = vadd.f32 %v1131, 1e-05
    %v1145 = vadd.f32 %v1132, 1e-05
    %v1146 = vadd.f32 %v1133, 1e-05
    %v1147 = vrsqrt.pop %v1141
    %v1148 = vrsqrt.pop %v1142
    %v1149 = vrsqrt.pop %v1143
    %v1150 = vrsqrt.pop %v1144
    %v1151 = vrsqrt.pop %v1145
    %v1152 = vrsqrt.pop %v1146
    %v1153 = vmul.f32 %v1135, %v1147
    %v1154 = vmul.f32 %v1136, %v1148
    %v1155 = vmul.f32 %v1137, %v1149
    %v1156 = vmul.f32 %v1138, %v1150
    %v1157 = vmul.f32 %v1139, %v1151
    %v1158 = vmul.f32 %v1140, %v1152
    %s1159 = scalar_lea.vmem %s6, 48
    %v1160 = vld [vmem:[%s1159] sm:$0xff]
    %v1161 = vld [vmem:[%s1159 + $0x8] sm:$0xff]
    %v1162 = vld [vmem:[%s1159 + $0x10] sm:$0xff]
    %v1163 = vld [vmem:[%s1159 + $0x18] sm:$0xff]
    %v1164 = vld [vmem:[%s1159 + $0x20] sm:$0xff]
    %v1165 = vld [vmem:[%s1159 + $0x28] sm:$0xff]
    %v1166 = vmul.f32 %v1110, %v1153
    %v1167 = vmul.f32 %v1111, %v1154
    %v1168 = vmul.f32 %v1112, %v1155
    %v1169 = vmul.f32 %v1113, %v1156
    %v1170 = vmul.f32 %v1114, %v1157
    %v1171 = vmul.f32 %v1115, %v1158
    %v1172 = vsub.f32 %v1160, %v1166
    %v1173 = vsub.f32 %v1161, %v1167
    %v1174 = vsub.f32 %v1162, %v1168
    %v1175 = vsub.f32 %v1163, %v1169
    %v1176 = vsub.f32 %v1164, %v1170
    %v1177 = vsub.f32 %v1165, %v1171
    %1179 = vset.pattern.permute.xlu0 0
    %1180 = vperm.xlu0 %1179, %v1153
    %v1181 = vpop.permute.xlu0 %1180
    %1184 = vset.pattern.permute.xlu0 0
    %1185 = vperm.xlu0 %1184, %v1154
    %v1186 = vpop.permute.xlu0 %1185
    %1189 = vset.pattern.permute.xlu0 0
    %1190 = vperm.xlu0 %1189, %v1155
    %v1191 = vpop.permute.xlu0 %1190
    %1194 = vset.pattern.permute.xlu0 0
    %1195 = vperm.xlu0 %1194, %v1156
    %v1196 = vpop.permute.xlu0 %1195
    %1199 = vset.pattern.permute.xlu0 0
    %1200 = vperm.xlu0 %1199, %v1157
    %v1201 = vpop.permute.xlu0 %1200
    %1204 = vset.pattern.permute.xlu0 0
    %1205 = vperm.xlu0 %1204, %v1158
    %v1206 = vpop.permute.xlu0 %1205
    %v1208 = vmul.f32 %v1181, %v1050
    %v1209 = vmul.f32 %v1181, %v1051
    %v1210 = vmul.f32 %v1186, %v1052
    %v1211 = vmul.f32 %v1186, %v1053
    %v1212 = vmul.f32 %v1191, %v1054
    %v1213 = vmul.f32 %v1191, %v1055
    %v1214 = vmul.f32 %v1196, %v1056
    %v1215 = vmul.f32 %v1196, %v1057
    %v1216 = vmul.f32 %v1201, %v1058
    %v1217 = vmul.f32 %v1201, %v1059
    %v1218 = vmul.f32 %v1206, %v1060
    %v1219 = vmul.f32 %v1206, %v1061
    %1221 = vset.pattern.permute.xlu0 0
    %1222 = vperm.xlu0 %1221, %v1172
    %v1223 = vpop.permute.xlu0 %1222
    %1226 = vset.pattern.permute.xlu0 0
    %1227 = vperm.xlu0 %1226, %v1173
    %v1228 = vpop.permute.xlu0 %1227
    %1231 = vset.pattern.permute.xlu0 0
    %1232 = vperm.xlu0 %1231, %v1174
    %v1233 = vpop.permute.xlu0 %1232
    %1236 = vset.pattern.permute.xlu0 0
    %1237 = vperm.xlu0 %1236, %v1175
    %v1238 = vpop.permute.xlu0 %1237
    %1241 = vset.pattern.permute.xlu0 0
    %1242 = vperm.xlu0 %1241, %v1176
    %v1243 = vpop.permute.xlu0 %1242
    %1246 = vset.pattern.permute.xlu0 0
    %1247 = vperm.xlu0 %1246, %v1177
    %v1248 = vpop.permute.xlu0 %1247
    %v1250 = vadd.f32 %v1208, %v1223
    %v1251 = vadd.f32 %v1209, %v1223
    %v1252 = vadd.f32 %v1210, %v1228
    %v1253 = vadd.f32 %v1211, %v1228
    %v1254 = vadd.f32 %v1212, %v1233
    %v1255 = vadd.f32 %v1213, %v1233
    %v1256 = vadd.f32 %v1214, %v1238
    %v1257 = vadd.f32 %v1215, %v1238
    %v1258 = vadd.f32 %v1216, %v1243
    %v1259 = vadd.f32 %v1217, %v1243
    %v1260 = vadd.f32 %v1218, %v1248
    %v1261 = vadd.f32 %v1219, %v1248
    %1262 = vrot.lane.b32.xlu0 %v1250, 4
    %v1263 = vpop.permute.xlu0 %1262
    %1264 = vrot.lane.b32.xlu0 %v1252, 4
    %v1265 = vpop.permute.xlu0 %1264
    %1266 = vrot.lane.b32.xlu0 %v1254, 4
    %v1267 = vpop.permute.xlu0 %1266
    %1268 = vrot.lane.b32.xlu0 %v1256, 4
    %v1269 = vpop.permute.xlu0 %1268
    %1270 = vrot.lane.b32.xlu0 %v1258, 4
    %v1271 = vpop.permute.xlu0 %1270
    %1272 = vrot.lane.b32.xlu0 %v1260, 4
    %v1273 = vpop.permute.xlu0 %1272
    %1274 = vrot.lane.b32.xlu0 %v1251, 4
    %v1275 = vpop.permute.xlu0 %1274
    %1276 = vrot.lane.b32.xlu0 %v1253, 4
    %v1277 = vpop.permute.xlu0 %1276
    %1278 = vrot.lane.b32.xlu0 %v1255, 4
    %v1279 = vpop.permute.xlu0 %1278
    %1280 = vrot.lane.b32.xlu0 %v1257, 4
    %v1281 = vpop.permute.xlu0 %1280
    %1282 = vrot.lane.b32.xlu0 %v1259, 4
    %v1283 = vpop.permute.xlu0 %1282
    %1284 = vrot.lane.b32.xlu0 %v1261, 4
    %v1285 = vpop.permute.xlu0 %1284
    %vm1286 = vcmp.lt.s32.totalorder %v137, 4
    %v1287 = vsel %vm1286, %v1263, %v1275
    %v1288 = vsel %vm1286, %v1265, %v1277
    %v1289 = vsel %vm1286, %v1267, %v1279
    %v1290 = vsel %vm1286, %v1269, %v1281
    %v1291 = vsel %vm1286, %v1271, %v1283
    %v1292 = vsel %vm1286, %v1273, %v1285
    %v1293 = vsel %vm1286, %v1275, %v1263
    %v1294 = vsel %vm1286, %v1277, %v1265
    %v1295 = vsel %vm1286, %v1279, %v1267
    %v1296 = vsel %vm1286, %v1281, %v1269
    %v1297 = vsel %vm1286, %v1283, %v1271
    %v1298 = vsel %vm1286, %v1285, %v1273
    %v1299 = vsel %vm169, 1, 0
    %v1300 = vsel %vm170, 1, 0
    %vm1301 = vcmp.eq.s32.totalorder %v1299, 1
    %vm1302 = vcmp.eq.s32.totalorder %v1300, 1
    %v1303 = vsel %vm1301, %v1293, 0.0
    %v1304 = vsel %vm1302, %v1287, 0.0
    %v1305 = vsel %vm1301, %v1294, 0.0
    %v1306 = vsel %vm1302, %v1288, 0.0
    %v1307 = vsel %vm1301, %v1295, 0.0
    %v1308 = vsel %vm1302, %v1289, 0.0
    %v1309 = vsel %vm1301, %v1296, 0.0
    %v1310 = vsel %vm1302, %v1290, 0.0
    %v1311 = vsel %vm1301, %v1297, 0.0
    %v1312 = vsel %vm1302, %v1291, 0.0
    %v1313 = vsel %vm1301, %v1298, 0.0
    %v1314 = vsel %vm1302, %v1292, 0.0
    %v1315 = vpack.c.bf16 %v1305, %v1303
    %v1316 = vpack.c.bf16 %v1306, %v1304
    %v1317 = vpack.c.bf16 %v1309, %v1307
    %v1318 = vpack.c.bf16 %v1310, %v1308
    %v1319 = vpack.c.bf16 %v1313, %v1311
    %v1320 = vpack.c.bf16 %v1314, %v1312
    %1321 = vst [vmem:[#allocation2] sm:$0xff] %v1315
    %1322 = vst [vmem:[#allocation2 + $0x8] sm:$0xff] %v1316
    %1323 = vst [vmem:[#allocation2 + $0x10] sm:$0xff] %v1317
    %1324 = vst [vmem:[#allocation2 + $0x18] sm:$0xff] %v1318
    %1325 = vst [vmem:[#allocation2 + $0x20] sm:$0xff] %v1319
    %1326 = vst [vmem:[#allocation2 + $0x28] sm:$0xff] %v1320
    %v1327 = vpack.c.bf16 %v1252, %v1250
    %v1328 = vpack.c.bf16 %v1253, %v1251
    %v1329 = vpack.c.bf16 %v1256, %v1254
    %v1330 = vpack.c.bf16 %v1257, %v1255
    %v1331 = vpack.c.bf16 %v1260, %v1258
    %v1332 = vpack.c.bf16 %v1261, %v1259
    %1333 = vst [vmem:[#allocation2 + $0x30] sm:$0xff] %v1327
    %1334 = vst [vmem:[#allocation2 + $0x38] sm:$0xff] %v1328
    %1335 = vst [vmem:[#allocation2 + $0x40] sm:$0xff] %v1329
    %1336 = vst [vmem:[#allocation2 + $0x48] sm:$0xff] %v1330
    %1337 = vst [vmem:[#allocation2 + $0x50] sm:$0xff] %v1331
    %1338 = vst [vmem:[#allocation2 + $0x58] sm:$0xff] %v1332
    %1339 = vrot.lane.b32.xlu0 %v1250, 124
    %v1340 = vpop.permute.xlu0 %1339
    %1341 = vrot.lane.b32.xlu0 %v1252, 124
    %v1342 = vpop.permute.xlu0 %1341
    %1343 = vrot.lane.b32.xlu0 %v1254, 124
    %v1344 = vpop.permute.xlu0 %1343
    %1345 = vrot.lane.b32.xlu0 %v1256, 124
    %v1346 = vpop.permute.xlu0 %1345
    %1347 = vrot.lane.b32.xlu0 %v1258, 124
    %v1348 = vpop.permute.xlu0 %1347
    %1349 = vrot.lane.b32.xlu0 %v1260, 124
    %v1350 = vpop.permute.xlu0 %1349
    %1351 = vrot.lane.b32.xlu0 %v1251, 124
    %v1352 = vpop.permute.xlu0 %1351
    %1353 = vrot.lane.b32.xlu0 %v1253, 124
    %v1354 = vpop.permute.xlu0 %1353
    %1355 = vrot.lane.b32.xlu0 %v1255, 124
    %v1356 = vpop.permute.xlu0 %1355
    %1357 = vrot.lane.b32.xlu0 %v1257, 124
    %v1358 = vpop.permute.xlu0 %1357
    %1359 = vrot.lane.b32.xlu0 %v1259, 124
    %v1360 = vpop.permute.xlu0 %1359
    %1361 = vrot.lane.b32.xlu0 %v1261, 124
    %v1362 = vpop.permute.xlu0 %1361
    %vm1363 = vcmp.lt.s32.totalorder %v137, 124
    %v1364 = vsel %vm1363, %v1340, %v1352
    %v1365 = vsel %vm1363, %v1342, %v1354
    %v1366 = vsel %vm1363, %v1344, %v1356
    %v1367 = vsel %vm1363, %v1346, %v1358
    %v1368 = vsel %vm1363, %v1348, %v1360
    %v1369 = vsel %vm1363, %v1350, %v1362
    %v1370 = vsel %vm1363, %v1352, %v1340
    %v1371 = vsel %vm1363, %v1354, %v1342
    %v1372 = vsel %vm1363, %v1356, %v1344
    %v1373 = vsel %vm1363, %v1358, %v1346
    %v1374 = vsel %vm1363, %v1360, %v1348
    %v1375 = vsel %vm1363, %v1362, %v1350
    %v1376 = vsel %vm209, 1, 0
    %v1377 = vsel %vm210, 1, 0
    %vm1378 = vcmp.eq.s32.totalorder %v1376, 1
    %vm1379 = vcmp.eq.s32.totalorder %v1377, 1
    %v1380 = vsel %vm1378, %v1364, 0.0
    %v1381 = vsel %vm1379, %v1370, 0.0
    %v1382 = vsel %vm1378, %v1365, 0.0
    %v1383 = vsel %vm1379, %v1371, 0.0
    %v1384 = vsel %vm1378, %v1366, 0.0
    %v1385 = vsel %vm1379, %v1372, 0.0
    %v1386 = vsel %vm1378, %v1367, 0.0
    %v1387 = vsel %vm1379, %v1373, 0.0
    %v1388 = vsel %vm1378, %v1368, 0.0
    %v1389 = vsel %vm1379, %v1374, 0.0
    %v1390 = vsel %vm1378, %v1369, 0.0
    %v1391 = vsel %vm1379, %v1375, 0.0
    %v1392 = vpack.c.bf16 %v1382, %v1380
    %v1393 = vpack.c.bf16 %v1383, %v1381
    %v1394 = vpack.c.bf16 %v1386, %v1384
    %v1395 = vpack.c.bf16 %v1387, %v1385
    %v1396 = vpack.c.bf16 %v1390, %v1388
    %v1397 = vpack.c.bf16 %v1391, %v1389
    %1398 = vst [vmem:[#allocation2 + $0x60] sm:$0xff] %v1392
    %1399 = vst [vmem:[#allocation2 + $0x68] sm:$0xff] %v1393
    %1400 = vst [vmem:[#allocation2 + $0x70] sm:$0xff] %v1394
    %1401 = vst [vmem:[#allocation2 + $0x78] sm:$0xff] %v1395
    %1402 = vst [vmem:[#allocation2 + $0x80] sm:$0xff] %v1396
    %1403 = vst [vmem:[#allocation2 + $0x88] sm:$0xff] %v1397
    %s1404 = scalar_lea.vmem %s3, 96
    %v1405 = vld [vmem:[%s1404] sm:$0xff]
    %v1406 = vld [vmem:[%s1404 + $0x8] sm:$0xff]
    %v1407 = vld [vmem:[%s1404 + $0x10] sm:$0xff]
    %v1408 = vld [vmem:[%s1404 + $0x18] sm:$0xff]
    %v1409 = vld [vmem:[%s1404 + $0x20] sm:$0xff]
    %v1410 = vld [vmem:[%s1404 + $0x28] sm:$0xff]
    %v1411 = vld [vmem:[#allocation2] sm:$0xff]
    %v1412 = vld [vmem:[#allocation2 + $0x8] sm:$0xff]
    %v1413 = vld [vmem:[#allocation2 + $0x10] sm:$0xff]
    %v1414 = vld [vmem:[#allocation2 + $0x18] sm:$0xff]
    %v1415 = vld [vmem:[#allocation2 + $0x20] sm:$0xff]
    %v1416 = vld [vmem:[#allocation2 + $0x28] sm:$0xff]
    %v1417 = vld [vmem:[#allocation2 + $0x30] sm:$0xff]
    %v1418 = vld [vmem:[#allocation2 + $0x38] sm:$0xff]
    %v1419 = vld [vmem:[#allocation2 + $0x40] sm:$0xff]
    %v1420 = vld [vmem:[#allocation2 + $0x48] sm:$0xff]
    %v1421 = vld [vmem:[#allocation2 + $0x50] sm:$0xff]
    %v1422 = vld [vmem:[#allocation2 + $0x58] sm:$0xff]
    %v1423 = vld [vmem:[#allocation2 + $0x60] sm:$0xff]
    %v1424 = vld [vmem:[#allocation2 + $0x68] sm:$0xff]
    %v1425 = vld [vmem:[#allocation2 + $0x70] sm:$0xff]
    %v1426 = vld [vmem:[#allocation2 + $0x78] sm:$0xff]
    %v1427 = vld [vmem:[#allocation2 + $0x80] sm:$0xff]
    %v1428 = vld [vmem:[#allocation2 + $0x88] sm:$0xff]
    %s1429 = scalar_lea.vmem %s4, 96
    %v1430 = vld [vmem:[%s1429] sm:$0xff]
    %v1431 = vld [vmem:[%s1429 + $0x8] sm:$0xff]
    %v1432 = vld [vmem:[%s1429 + $0x10] sm:$0xff]
    %v1433 = vld [vmem:[%s1429 + $0x18] sm:$0xff]
    %v1434 = vld [vmem:[%s1429 + $0x20] sm:$0xff]
    %v1435 = vld [vmem:[%s1429 + $0x28] sm:$0xff]
    %1437 = vset.pattern.permute.xlu0 0
    %1438 = vperm.xlu0 %1437, %v1430
    %v1439 = vpop.permute.xlu0 %1438
    %1442 = vset.pattern.permute.xlu0 0
    %1443 = vperm.xlu0 %1442, %v1431
    %v1444 = vpop.permute.xlu0 %1443
    %1447 = vset.pattern.permute.xlu0 0
    %1448 = vperm.xlu0 %1447, %v1432
    %v1449 = vpop.permute.xlu0 %1448
    %1452 = vset.pattern.permute.xlu0 0
    %1453 = vperm.xlu0 %1452, %v1433
    %v1454 = vpop.permute.xlu0 %1453
    %1457 = vset.pattern.permute.xlu0 0
    %1458 = vperm.xlu0 %1457, %v1434
    %v1459 = vpop.permute.xlu0 %1458
    %1462 = vset.pattern.permute.xlu0 0
    %1463 = vperm.xlu0 %1462, %v1435
    %v1464 = vpop.permute.xlu0 %1463
    %v1472 = vunpack.c.l.b16 %v1405
    %v1473 = vunpack.c.h.b16 %v1405
    %v1474 = vunpack.c.l.b16 %v1406
    %v1475 = vunpack.c.h.b16 %v1406
    %v1476 = vunpack.c.l.b16 %v1407
    %v1477 = vunpack.c.h.b16 %v1407
    %v1478 = vunpack.c.l.b16 %v1408
    %v1479 = vunpack.c.h.b16 %v1408
    %v1480 = vunpack.c.l.b16 %v1409
    %v1481 = vunpack.c.h.b16 %v1409
    %v1482 = vunpack.c.l.b16 %v1410
    %v1483 = vunpack.c.h.b16 %v1410
    %v1484 = vpack.c.b16 %v1474, %v1472
    %v1485 = vpack.c.b16 %v1475, %v1473
    %v1486 = vpack.c.b16 %v1478, %v1476
    %v1487 = vpack.c.b16 %v1479, %v1477
    %v1488 = vpack.c.b16 %v1482, %v1480
    %v1489 = vpack.c.b16 %v1483, %v1481
    %v1494 = vsel %vm440, %v1485, 0
    %v1497 = vsel %vm440, %v1487, 0
    %v1500 = vsel %vm440, %v1489, 0
    %1502 = vmatprep.subr.bf16.mxu0 %v1412
    %1503 = vmatpush1.bf16.msra.mxu0 %v1411
    %1504 = vmatprep.subr.bf16.mxu0 %v1414
    %1505 = vmatpush1.bf16.msra.mxu0 %v1413
    %1506 = vmatprep.subr.bf16.mxu0 %v1416
    %1507 = vmatpush1.bf16.msra.mxu0 %v1415
    %1508 = vmatprep.subr.bf16.mxu0 %v1418
    %1509 = vmatpush1.bf16.msra.mxu0 %v1417
    %1510 = vmatprep.subr.bf16.mxu0 %v1420
    %1511 = vmatpush1.bf16.msra.mxu0 %v1419
    %1512 = vmatprep.subr.bf16.mxu0 %v1422
    %1513 = vmatpush1.bf16.msra.mxu0 %v1421
    %1514 = vmatprep.subr.bf16.mxu0 %v1424
    %1515 = vmatpush1.bf16.msra.mxu0 %v1423
    %1516 = vmatprep.subr.bf16.mxu0 %v1426
    %1517 = vmatpush1.bf16.msra.mxu0 %v1425
    %1518 = vmatprep.subr.bf16.mxu0 %v1428
    %1519 = vmatpush1.bf16.msra.mxu0 %v1427
    %1520 = vmatprep.subr.bf16.mxu0 0
    %1521 = vmatpush1.bf16.msra.mxu0 0
    %1522 = vmatprep.subr.bf16.mxu0 0
    %1523 = vmatpush1.bf16.msra.mxu0 0
    %1524 = vmatprep.subr.bf16.mxu0 0
    %1525 = vmatpush1.bf16.msra.mxu0 0
    %1526 = vmatprep.subr.bf16.mxu0 0
    %1527 = vmatpush1.bf16.msra.mxu0 0
    %1528 = vmatprep.subr.bf16.mxu0 0
    %1529 = vmatpush1.bf16.msra.mxu0 0
    %1530 = vmatprep.subr.bf16.mxu0 0
    %1531 = vmatpush1.bf16.msra.mxu0 0
    %1532 = vmatprep.subr.bf16.mxu0 0
    %1533 = vmatpush1.bf16.msra.mxu0 0
    %1534 = vmatprep.mubr.bf16.mxu0 %v1494
    %1535 = vmatmul.mubr.bf16.gmra.mrb[0].mxu0 %v1484
    %v1536 = vpop.f32.mrb[0].mxu0
    %v1537 = vadd.f32 %v1439, %v1536
    %v1538 = vpop.f32.mrb[0].mxu0
    %v1539 = vadd.f32 %v1439, %v1538
    %v1540 = vpop.f32.mrb[0].mxu0
    %v1541 = vadd.f32 %v1444, %v1540
    %v1542 = vpop.f32.mrb[0].mxu0
    %v1543 = vadd.f32 %v1444, %v1542
    %1544 = vmatprep.mubr.bf16.mxu0 %v1497
    %1545 = vmatmul.mubr.bf16.gmra.mrb[0].mxu0 %v1486
    %v1546 = vpop.f32.mrb[0].mxu0
    %v1547 = vadd.f32 %v1449, %v1546
    %v1548 = vpop.f32.mrb[0].mxu0
    %v1549 = vadd.f32 %v1449, %v1548
    %v1550 = vpop.f32.mrb[0].mxu0
    %v1551 = vadd.f32 %v1454, %v1550
    %v1552 = vpop.f32.mrb[0].mxu0
    %v1553 = vadd.f32 %v1454, %v1552
    %1554 = vmatprep.mubr.bf16.mxu0 %v1500
    %1555 = vmatmul.mubr.bf16.gmra.mrb[0].mxu0 %v1488
    %v1556 = vpop.f32.mrb[0].mxu0
    %v1557 = vadd.f32 %v1459, %v1556
    %v1558 = vpop.f32.mrb[0].mxu0
    %v1559 = vadd.f32 %v1459, %v1558
    %v1560 = vpop.f32.mrb[0].mxu0
    %v1561 = vadd.f32 %v1464, %v1560
    %v1562 = vpop.f32.mrb[0].mxu0
    %v1563 = vadd.f32 %v1464, %v1562
    %1564 = vdwg.mxu0
    %v1565 = vmax.f32 %v1537, 0.0
    %v1566 = vmax.f32 %v1539, 0.0
    %v1567 = vmax.f32 %v1541, 0.0
    %v1568 = vmax.f32 %v1543, 0.0
    %v1569 = vmax.f32 %v1547, 0.0
    %v1570 = vmax.f32 %v1549, 0.0
    %v1571 = vmax.f32 %v1551, 0.0
    %v1572 = vmax.f32 %v1553, 0.0
    %v1573 = vmax.f32 %v1557, 0.0
    %v1574 = vmax.f32 %v1559, 0.0
    %v1575 = vmax.f32 %v1561, 0.0
    %v1576 = vmax.f32 %v1563, 0.0
    %v1577 = vadd.f32 %v1565, %v1250
    %v1578 = vadd.f32 %v1566, %v1251
    %v1579 = vadd.f32 %v1567, %v1252
    %v1580 = vadd.f32 %v1568, %v1253
    %v1581 = vadd.f32 %v1569, %v1254
    %v1582 = vadd.f32 %v1570, %v1255
    %v1583 = vadd.f32 %v1571, %v1256
    %v1584 = vadd.f32 %v1572, %v1257
    %v1585 = vadd.f32 %v1573, %v1258
    %v1586 = vadd.f32 %v1574, %v1259
    %v1587 = vadd.f32 %v1575, %v1260
    %v1588 = vadd.f32 %v1576, %v1261
    %v1589 = vadd.f32 %v1577, %v1578
    %1590 = vadd.xlane.f32.xlu0 %v1589
    %v1591 = vpop.xlane.xlu0 %1590
    %v1592 = vadd.f32 %v1579, %v1580
    %1593 = vadd.xlane.f32.xlu0 %v1592
    %v1594 = vpop.xlane.xlu0 %1593
    %v1595 = vadd.f32 %v1581, %v1582
    %1596 = vadd.xlane.f32.xlu0 %v1595
    %v1597 = vpop.xlane.xlu0 %1596
    %v1598 = vadd.f32 %v1583, %v1584
    %1599 = vadd.xlane.f32.xlu0 %v1598
    %v1600 = vpop.xlane.xlu0 %1599
    %v1601 = vadd.f32 %v1585, %v1586
    %1602 = vadd.xlane.f32.xlu0 %v1601
    %v1603 = vpop.xlane.xlu0 %1602
    %v1604 = vadd.f32 %v1587, %v1588
    %1605 = vadd.xlane.f32.xlu0 %v1604
    %v1606 = vpop.xlane.xlu0 %1605
    %v1607 = vmul.f32 %v1577, %v1577
    %v1608 = vmul.f32 %v1578, %v1578
    %v1609 = vmul.f32 %v1579, %v1579
    %v1610 = vmul.f32 %v1580, %v1580
    %v1611 = vmul.f32 %v1581, %v1581
    %v1612 = vmul.f32 %v1582, %v1582
    %v1613 = vmul.f32 %v1583, %v1583
    %v1614 = vmul.f32 %v1584, %v1584
    %v1615 = vmul.f32 %v1585, %v1585
    %v1616 = vmul.f32 %v1586, %v1586
    %v1617 = vmul.f32 %v1587, %v1587
    %v1618 = vmul.f32 %v1588, %v1588
    %v1619 = vadd.f32 %v1607, %v1608
    %1620 = vadd.xlane.f32.xlu0 %v1619
    %v1621 = vpop.xlane.xlu0 %1620
    %v1622 = vadd.f32 %v1609, %v1610
    %1623 = vadd.xlane.f32.xlu0 %v1622
    %v1624 = vpop.xlane.xlu0 %1623
    %v1625 = vadd.f32 %v1611, %v1612
    %1626 = vadd.xlane.f32.xlu0 %v1625
    %v1627 = vpop.xlane.xlu0 %1626
    %v1628 = vadd.f32 %v1613, %v1614
    %1629 = vadd.xlane.f32.xlu0 %v1628
    %v1630 = vpop.xlane.xlu0 %1629
    %v1631 = vadd.f32 %v1615, %v1616
    %1632 = vadd.xlane.f32.xlu0 %v1631
    %v1633 = vpop.xlane.xlu0 %1632
    %v1634 = vadd.f32 %v1617, %v1618
    %1635 = vadd.xlane.f32.xlu0 %v1634
    %v1636 = vpop.xlane.xlu0 %1635
    %v1637 = vmul.f32 %v1591, 0.00390625
    %v1638 = vmul.f32 %v1594, 0.00390625
    %v1639 = vmul.f32 %v1597, 0.00390625
    %v1640 = vmul.f32 %v1600, 0.00390625
    %v1641 = vmul.f32 %v1603, 0.00390625
    %v1642 = vmul.f32 %v1606, 0.00390625
    %v1643 = vmul.f32 %v1621, 0.00390625
    %v1644 = vmul.f32 %v1624, 0.00390625
    %v1645 = vmul.f32 %v1627, 0.00390625
    %v1646 = vmul.f32 %v1630, 0.00390625
    %v1647 = vmul.f32 %v1633, 0.00390625
    %v1648 = vmul.f32 %v1636, 0.00390625
    %v1649 = vmul.f32 %v1637, %v1637
    %v1650 = vmul.f32 %v1638, %v1638
    %v1651 = vmul.f32 %v1639, %v1639
    %v1652 = vmul.f32 %v1640, %v1640
    %v1653 = vmul.f32 %v1641, %v1641
    %v1654 = vmul.f32 %v1642, %v1642
    %v1655 = vsub.f32 %v1643, %v1649
    %v1656 = vsub.f32 %v1644, %v1650
    %v1657 = vsub.f32 %v1645, %v1651
    %v1658 = vsub.f32 %v1646, %v1652
    %v1659 = vsub.f32 %v1647, %v1653
    %v1660 = vsub.f32 %v1648, %v1654
    %s1661 = scalar_lea.vmem %s5, 96
    %v1662 = vld [vmem:[%s1661] sm:$0xff]
    %v1663 = vld [vmem:[%s1661 + $0x8] sm:$0xff]
    %v1664 = vld [vmem:[%s1661 + $0x10] sm:$0xff]
    %v1665 = vld [vmem:[%s1661 + $0x18] sm:$0xff]
    %v1666 = vld [vmem:[%s1661 + $0x20] sm:$0xff]
    %v1667 = vld [vmem:[%s1661 + $0x28] sm:$0xff]
    %v1668 = vadd.f32 %v1655, 1e-05
    %v1669 = vadd.f32 %v1656, 1e-05
    %v1670 = vadd.f32 %v1657, 1e-05
    %v1671 = vadd.f32 %v1658, 1e-05
    %v1672 = vadd.f32 %v1659, 1e-05
    %v1673 = vadd.f32 %v1660, 1e-05
    %v1674 = vrsqrt.pop %v1668
    %v1675 = vrsqrt.pop %v1669
    %v1676 = vrsqrt.pop %v1670
    %v1677 = vrsqrt.pop %v1671
    %v1678 = vrsqrt.pop %v1672
    %v1679 = vrsqrt.pop %v1673
    %v1680 = vmul.f32 %v1662, %v1674
    %v1681 = vmul.f32 %v1663, %v1675
    %v1682 = vmul.f32 %v1664, %v1676
    %v1683 = vmul.f32 %v1665, %v1677
    %v1684 = vmul.f32 %v1666, %v1678
    %v1685 = vmul.f32 %v1667, %v1679
    %s1686 = scalar_lea.vmem %s6, 96
    %v1687 = vld [vmem:[%s1686] sm:$0xff]
    %v1688 = vld [vmem:[%s1686 + $0x8] sm:$0xff]
    %v1689 = vld [vmem:[%s1686 + $0x10] sm:$0xff]
    %v1690 = vld [vmem:[%s1686 + $0x18] sm:$0xff]
    %v1691 = vld [vmem:[%s1686 + $0x20] sm:$0xff]
    %v1692 = vld [vmem:[%s1686 + $0x28] sm:$0xff]
    %v1693 = vmul.f32 %v1637, %v1680
    %v1694 = vmul.f32 %v1638, %v1681
    %v1695 = vmul.f32 %v1639, %v1682
    %v1696 = vmul.f32 %v1640, %v1683
    %v1697 = vmul.f32 %v1641, %v1684
    %v1698 = vmul.f32 %v1642, %v1685
    %v1699 = vsub.f32 %v1687, %v1693
    %v1700 = vsub.f32 %v1688, %v1694
    %v1701 = vsub.f32 %v1689, %v1695
    %v1702 = vsub.f32 %v1690, %v1696
    %v1703 = vsub.f32 %v1691, %v1697
    %v1704 = vsub.f32 %v1692, %v1698
    %1706 = vset.pattern.permute.xlu0 0
    %1707 = vperm.xlu0 %1706, %v1680
    %v1708 = vpop.permute.xlu0 %1707
    %1711 = vset.pattern.permute.xlu0 0
    %1712 = vperm.xlu0 %1711, %v1681
    %v1713 = vpop.permute.xlu0 %1712
    %1716 = vset.pattern.permute.xlu0 0
    %1717 = vperm.xlu0 %1716, %v1682
    %v1718 = vpop.permute.xlu0 %1717
    %1721 = vset.pattern.permute.xlu0 0
    %1722 = vperm.xlu0 %1721, %v1683
    %v1723 = vpop.permute.xlu0 %1722
    %1726 = vset.pattern.permute.xlu0 0
    %1727 = vperm.xlu0 %1726, %v1684
    %v1728 = vpop.permute.xlu0 %1727
    %1731 = vset.pattern.permute.xlu0 0
    %1732 = vperm.xlu0 %1731, %v1685
    %v1733 = vpop.permute.xlu0 %1732
    %v1735 = vmul.f32 %v1708, %v1577
    %v1736 = vmul.f32 %v1708, %v1578
    %v1737 = vmul.f32 %v1713, %v1579
    %v1738 = vmul.f32 %v1713, %v1580
    %v1739 = vmul.f32 %v1718, %v1581
    %v1740 = vmul.f32 %v1718, %v1582
    %v1741 = vmul.f32 %v1723, %v1583
    %v1742 = vmul.f32 %v1723, %v1584
    %v1743 = vmul.f32 %v1728, %v1585
    %v1744 = vmul.f32 %v1728, %v1586
    %v1745 = vmul.f32 %v1733, %v1587
    %v1746 = vmul.f32 %v1733, %v1588
    %1748 = vset.pattern.permute.xlu0 0
    %1749 = vperm.xlu0 %1748, %v1699
    %v1750 = vpop.permute.xlu0 %1749
    %1753 = vset.pattern.permute.xlu0 0
    %1754 = vperm.xlu0 %1753, %v1700
    %v1755 = vpop.permute.xlu0 %1754
    %1758 = vset.pattern.permute.xlu0 0
    %1759 = vperm.xlu0 %1758, %v1701
    %v1760 = vpop.permute.xlu0 %1759
    %1763 = vset.pattern.permute.xlu0 0
    %1764 = vperm.xlu0 %1763, %v1702
    %v1765 = vpop.permute.xlu0 %1764
    %1768 = vset.pattern.permute.xlu0 0
    %1769 = vperm.xlu0 %1768, %v1703
    %v1770 = vpop.permute.xlu0 %1769
    %1773 = vset.pattern.permute.xlu0 0
    %1774 = vperm.xlu0 %1773, %v1704
    %v1775 = vpop.permute.xlu0 %1774
    %v1777 = vadd.f32 %v1735, %v1750
    %v1778 = vadd.f32 %v1736, %v1750
    %v1779 = vadd.f32 %v1737, %v1755
    %v1780 = vadd.f32 %v1738, %v1755
    %v1781 = vadd.f32 %v1739, %v1760
    %v1782 = vadd.f32 %v1740, %v1760
    %v1783 = vadd.f32 %v1741, %v1765
    %v1784 = vadd.f32 %v1742, %v1765
    %v1785 = vadd.f32 %v1743, %v1770
    %v1786 = vadd.f32 %v1744, %v1770
    %v1787 = vadd.f32 %v1745, %v1775
    %v1788 = vadd.f32 %v1746, %v1775
    %1789 = vst [vmem:[#allocation3] sm:$0xff] %v1777
    %1790 = vst [vmem:[#allocation3 + $0x8] sm:$0xff] %v1779
    %1791 = vst [vmem:[#allocation3 + $0x10] sm:$0xff] %v1781
    %1792 = vst [vmem:[#allocation3 + $0x18] sm:$0xff] %v1783
    %1793 = vst [vmem:[#allocation3 + $0x20] sm:$0xff] %v1785
    %1794 = vst [vmem:[#allocation3 + $0x28] sm:$0xff] %v1787
    %s1795 = scalar_lea.vmem [#allocation3], 48
    %1796 = vst [vmem:[%s1795] sm:$0xff] %v1778
    %1797 = vst [vmem:[%s1795 + $0x8] sm:$0xff] %v1780
    %1798 = vst [vmem:[%s1795 + $0x10] sm:$0xff] %v1782
    %1799 = vst [vmem:[%s1795 + $0x18] sm:$0xff] %v1784
    %1800 = vst [vmem:[%s1795 + $0x20] sm:$0xff] %v1786
    %1801 = vst [vmem:[%s1795 + $0x28] sm:$0xff] %v1788
    // Predicated region
    $region30: #{tpu_custom_call.1} parent=1 // pred_check
      _
    $region31: #{tpu_custom_call.1} parent=1 // pred_check_branch
      %1803 = sbr.rel (0) target = $region33
    $region32: #{tpu_custom_call.1} parent=1 // pred_region
      %s1805 = ssub.s32 1536, 1536
      %1806 = vsyncadd [#allocation4], %s1805
      %s1807 = sshll.u32 [#allocation3], 4
      %s1808 = int_to_ptr.vmem [resolvable:$true] %s1807
      %1813 = dma.vmem_to_hbm [thread:$0]  %s1808, 1536, %s7, [#allocation4], 128, 128, 8
    $region33: #{tpu_custom_call.1} parent=1 // pred_fallthru
      _
    // Predicated region
    $region34: #{tpu_custom_call.1} parent=1 // pred_check
      _
    $region35: #{tpu_custom_call.1} parent=1 // pred_check_branch
      %1815 = sbr.rel (0) target = $region37
    $region36: #{tpu_custom_call.1} parent=1 // pred_region
      %1816 = dma.done [#allocation4], 1536
    $region37: #{tpu_custom_call.1} parent=1 // pred_fallthru
      _
    %1817 = vsyncpa [#allocation4], 1

</llo_original>
